<compile_context>
chip_gen: v6e
topology: v6e:2x2x1
jax: 0.10.0
libtpu: 0.0.40
codegen_flags: <defaults>
</compile_context>

<pallas_src>
import functools

import jax
import jax.numpy as jnp
from jax.experimental import pallas as pl
from jax.experimental.pallas import tpu as pltpu


# ----------------------------------------------------------------------------
# Fused kernel: embedding gather + hoisted input projection + unrolled tanh
# recurrence + MLP head, all in one invocation.
# ----------------------------------------------------------------------------
def fused_rnn_kernel(*refs, S, B, V, n_lin, has_h0):
    i = 0
    tok_ref = refs[i]; i += 1          # SMEM (S*B,) int32
    emb_ref = refs[i]; i += 1          # VMEM (V, 1, E)
    wih_ref = refs[i]; i += 1          # VMEM (E, H)   = W_ih^T
    whh_ref = refs[i]; i += 1          # VMEM (H, H)   = W_hh^T
    bias_ref = refs[i]; i += 1         # VMEM (1, H)   = b_ih + b_hh
    h0_ref = None
    if has_h0:
        h0_ref = refs[i]; i += 1       # VMEM (B, H)
    lin_refs = refs[i:i + 2 * n_lin]; i += 2 * n_lin
    ys_ref = refs[i]; i += 1           # out  (S, B, H)
    head_ref = refs[i]; i += 1         # out  (B, Dout)
    x_scr = refs[i]; i += 1            # VMEM scratch (S*B, E)

    E = emb_ref.shape[-1]
    H = whh_ref.shape[0]

    # --- 1) embedding gather: exact row copies from the VMEM-resident table.
    for k in range(S * B):
        row = emb_ref[tok_ref[k]]                       # (1, E), dynamic index
        x_scr[pl.ds(k, 1), :] = row

    # --- 2) hoisted input projection for all timesteps (one MXU pass).
    xw = (jnp.dot(x_scr[...], wih_ref[...],
                  preferred_element_type=jnp.float32)
          + bias_ref[...])                              # (S*B, H)

    # --- 3) recurrence, fully unrolled (S is static & small).
    whh = whh_ref[...]
    if has_h0:
        h = h0_ref[...]
    else:
        h = jnp.zeros((B, H), jnp.float32)
    for t in range(S):
        z = xw[t * B:(t + 1) * B, :] + jnp.dot(
            h, whh, preferred_element_type=jnp.float32)
        h = jnp.tanh(z)
        ys_ref[t] = h                                   # VMEM write; one HBM
                                                        # writeback at kernel end

    # --- 4) fused MLP head on final hidden state (tanh on hidden layers,
    #        no activation on the last layer).
    for j in range(n_lin):
        w_ref = lin_refs[2 * j]
        b_ref = lin_refs[2 * j + 1]
        h = jnp.dot(h, w_ref[...], preferred_element_type=jnp.float32) + b_ref[...]
        if j < n_lin - 1:
            h = jnp.tanh(h)
    head_ref[...] = h


def rnn_module_forward(params, tokens, hid=None):
    """Full module forward. tokens: (S, B) int32. Returns (ys, head)."""
    S, B = tokens.shape
    V, E = params["embedding"].shape
    H = params["w_hh"].shape[0]
    n_lin = len(params["linears"])
    has_h0 = hid is not None

    emb3d = jnp.asarray(params["embedding"], jnp.float32).reshape(V, 1, E)
    wih_t = jnp.asarray(params["w_ih"].T, jnp.float32)          # (E, H)
    whh_t = jnp.asarray(params["w_hh"].T, jnp.float32)          # (H, H)
    bias = (params["b_ih"] + params["b_hh"]).reshape(1, H).astype(jnp.float32)
    tok_flat = tokens.reshape(S * B).astype(jnp.int32)

    inputs = [tok_flat, emb3d, wih_t, whh_t, bias]
    in_specs = [
        pl.BlockSpec((S * B,), lambda: (0,),
                     memory_space=pltpu.MemorySpace.SMEM),       # tokens
        pl.BlockSpec((V, 1, E), lambda: (0, 0, 0)),              # emb table
        pl.BlockSpec((E, H), lambda: (0, 0)),                    # W_ih^T
        pl.BlockSpec((H, H), lambda: (0, 0)),                    # W_hh^T
        pl.BlockSpec((1, H), lambda: (0, 0)),                    # folded bias
    ]
    if has_h0:
        inputs.append(jnp.asarray(hid, jnp.float32).reshape(B, H))
        in_specs.append(pl.BlockSpec((B, H), lambda: (0, 0)))

    out_dim = H
    for (w, b) in params["linears"]:
        dout, din = w.shape
        inputs += [jnp.asarray(w.T, jnp.float32),
                   b.reshape(1, dout).astype(jnp.float32)]
        in_specs += [pl.BlockSpec((din, dout), lambda: (0, 0)),
                     pl.BlockSpec((1, dout), lambda: (0, 0))]
        out_dim = dout

    kernel = functools.partial(fused_rnn_kernel, S=S, B=B, V=V,
                               n_lin=n_lin, has_h0=has_h0)

    ys, head = pl.pallas_call(
        kernel,
        out_shape=(jax.ShapeDtypeStruct((S, B, H), jnp.float32),
                   jax.ShapeDtypeStruct((B, out_dim), jnp.float32)),
        in_specs=in_specs,
        out_specs=(pl.BlockSpec((S, B, H), lambda: (0, 0, 0)),
                   pl.BlockSpec((B, out_dim), lambda: (0, 0))),
        scratch_shapes=[pltpu.VMEM((S * B, E), jnp.float32)],    # gathered x
    )(*inputs)
    return ys, head


# ----------------------------------------------------------------------------
# Pure-JAX reference for correctness check
# ----------------------------------------------------------------------------
def reference_forward(params, tokens):
    x_emb = params["embedding"][tokens]                          # (S, B, E)
    S, B, E = x_emb.shape
    H = params["w_hh"].shape[0]
    h0 = jnp.zeros((B, H), jnp.float32)

    def step(h, x_t):
        h_new = jnp.tanh(x_t @ params["w_ih"].T + params["b_ih"]
                         + h @ params["w_hh"].T + params["b_hh"])
        return h_new, h_new

    h_fin, ys = jax.lax.scan(step, h0, x_emb)
    h = h_fin
    for (w, b) in params["linears"][:-1]:
        h = jnp.tanh(h @ w.T + b)
    w_last, b_last = params["linears"][-1]
    h = h @ w_last.T + b_last
    return ys, h


if __name__ == "__main__":
    # Module config: hidden_size=32, embed_size=16, vocab_size=50, embed=True,
    # num_rnn_layers=1, output_size=8, linear_layer_sizes=[24],
    # activation=tanh, output_activation=None, out_squeeze=False.
    hidden_size, embed_size, vocab_size, output_size = 32, 16, 50, 8
    linear_layer_sizes = [hidden_size, 24, output_size]
    seq_len, batch = 8, 2

    key = jax.random.PRNGKey(0)
    ks = jax.random.split(key, 12)
    bound = 1.0 / jnp.sqrt(hidden_size)

    params = {
        "embedding": jax.random.normal(ks[0], (vocab_size, embed_size),
                                       jnp.float32),
        "w_ih": jax.random.uniform(ks[1], (hidden_size, embed_size),
                                   jnp.float32, -bound, bound),
        "w_hh": jax.random.uniform(ks[2], (hidden_size, hidden_size),
                                   jnp.float32, -bound, bound),
        "b_ih": jax.random.uniform(ks[3], (hidden_size,), jnp.float32,
                                   -bound, bound),
        "b_hh": jax.random.uniform(ks[4], (hidden_size,), jnp.float32,
                                   -bound, bound),
    }
    linears = []
    for i, (din, dout) in enumerate(zip(linear_layer_sizes[:-1],
                                        linear_layer_sizes[1:])):
        lb = 1.0 / jnp.sqrt(din)
        w = jax.random.uniform(ks[5 + 2 * i], (dout, din), jnp.float32,
                               -lb, lb)
        b = jax.random.uniform(ks[6 + 2 * i], (dout,), jnp.float32, -lb, lb)
        linears.append((w, b))
    params["linears"] = linears

    tokens = jax.random.randint(jax.random.PRNGKey(42), (seq_len, batch),
                                0, vocab_size, jnp.int32)

    ys, head = rnn_module_forward(params, tokens)
    jax.block_until_ready((ys, head))

    ys_ref, head_ref = reference_forward(params, tokens)
    assert ys.shape == (seq_len, batch, hidden_size)
    assert head.shape == (batch, output_size)
    assert jnp.allclose(ys, ys_ref, atol=1e-5, rtol=1e-5)
    assert jnp.allclose(head, head_ref, atol=1e-5, rtol=1e-5)

    print("KERNEL_OK")
</pallas_src>

<mosaic_0001>
module attributes {stable_mosaic.version = 11 : i64} {
  func.func @fused_rnn_kernel(%arg0: memref<16xi32, #tpu.memory_space<smem>>, %arg1: memref<50x1x16xf32, #tpu.memory_space<vmem>>, %arg2: memref<16x32xf32, #tpu.memory_space<vmem>>, %arg3: memref<32x32xf32, #tpu.memory_space<vmem>>, %arg4: memref<1x32xf32, #tpu.memory_space<vmem>>, %arg5: memref<32x24xf32, #tpu.memory_space<vmem>>, %arg6: memref<1x24xf32, #tpu.memory_space<vmem>>, %arg7: memref<24x8xf32, #tpu.memory_space<vmem>>, %arg8: memref<1x8xf32, #tpu.memory_space<vmem>>, %arg9: memref<8x2x32xf32, #tpu.memory_space<vmem>>, %arg10: memref<2x8xf32, #tpu.memory_space<vmem>>, %arg11: memref<16x16xf32, #tpu.memory_space<vmem>>) attributes {dimension_semantics = [], scalar_prefetch = 0 : i64, scratch_operands = 1 : i64, tpu.core_type = #tpu.core_type<tc>} {
    %c0 = arith.constant 0 : index
    %0 = memref.load %arg0[%c0] : memref<16xi32, #tpu.memory_space<smem>>
    %1 = arith.index_cast %0 : i32 to index
    %c0_0 = arith.constant 0 : index
    %c0_1 = arith.constant 0 : index
    %2 = vector.load %arg1[%1, %c0_0, %c0_1] : memref<50x1x16xf32, #tpu.memory_space<vmem>>, vector<1x1x16xf32>
    %3 = vector.shape_cast %2 : vector<1x1x16xf32> to vector<1x16xf32>
    %c0_2 = arith.constant 0 : index
    %c0_3 = arith.constant 0 : index
    %4 = vector.load %arg11[%c0_2, %c0_3] : memref<16x16xf32, #tpu.memory_space<vmem>>, vector<1x16xf32>
    tpu.vector_store %arg11[%c0_2, %c0_3], %3 {strides = array<i32>} : memref<16x16xf32, #tpu.memory_space<vmem>>, vector<1x16xf32>,
    %c1 = arith.constant 1 : index
    %5 = memref.load %arg0[%c1] : memref<16xi32, #tpu.memory_space<smem>>
    %6 = arith.index_cast %5 : i32 to index
    %c0_4 = arith.constant 0 : index
    %c0_5 = arith.constant 0 : index
    %7 = vector.load %arg1[%6, %c0_4, %c0_5] : memref<50x1x16xf32, #tpu.memory_space<vmem>>, vector<1x1x16xf32>
    %8 = vector.shape_cast %7 : vector<1x1x16xf32> to vector<1x16xf32>
    %c1_6 = arith.constant 1 : index
    %c0_7 = arith.constant 0 : index
    %9 = vector.load %arg11[%c1_6, %c0_7] : memref<16x16xf32, #tpu.memory_space<vmem>>, vector<1x16xf32>
    tpu.vector_store %arg11[%c1_6, %c0_7], %8 {strides = array<i32>} : memref<16x16xf32, #tpu.memory_space<vmem>>, vector<1x16xf32>,
    %c2 = arith.constant 2 : index
    %10 = memref.load %arg0[%c2] : memref<16xi32, #tpu.memory_space<smem>>
    %11 = arith.index_cast %10 : i32 to index
    %c0_8 = arith.constant 0 : index
    %c0_9 = arith.constant 0 : index
    %12 = vector.load %arg1[%11, %c0_8, %c0_9] : memref<50x1x16xf32, #tpu.memory_space<vmem>>, vector<1x1x16xf32>
    %13 = vector.shape_cast %12 : vector<1x1x16xf32> to vector<1x16xf32>
    %c2_10 = arith.constant 2 : index
    %c0_11 = arith.constant 0 : index
    %14 = vector.load %arg11[%c2_10, %c0_11] : memref<16x16xf32, #tpu.memory_space<vmem>>, vector<1x16xf32>
    tpu.vector_store %arg11[%c2_10, %c0_11], %13 {strides = array<i32>} : memref<16x16xf32, #tpu.memory_space<vmem>>, vector<1x16xf32>,
    %c3 = arith.constant 3 : index
    %15 = memref.load %arg0[%c3] : memref<16xi32, #tpu.memory_space<smem>>
    %16 = arith.index_cast %15 : i32 to index
    %c0_12 = arith.constant 0 : index
    %c0_13 = arith.constant 0 : index
    %17 = vector.load %arg1[%16, %c0_12, %c0_13] : memref<50x1x16xf32, #tpu.memory_space<vmem>>, vector<1x1x16xf32>
    %18 = vector.shape_cast %17 : vector<1x1x16xf32> to vector<1x16xf32>
    %c3_14 = arith.constant 3 : index
    %c0_15 = arith.constant 0 : index
    %19 = vector.load %arg11[%c3_14, %c0_15] : memref<16x16xf32, #tpu.memory_space<vmem>>, vector<1x16xf32>
    tpu.vector_store %arg11[%c3_14, %c0_15], %18 {strides = array<i32>} : memref<16x16xf32, #tpu.memory_space<vmem>>, vector<1x16xf32>,
    %c4 = arith.constant 4 : index
    %20 = memref.load %arg0[%c4] : memref<16xi32, #tpu.memory_space<smem>>
    %21 = arith.index_cast %20 : i32 to index
    %c0_16 = arith.constant 0 : index
    %c0_17 = arith.constant 0 : index
    %22 = vector.load %arg1[%21, %c0_16, %c0_17] : memref<50x1x16xf32, #tpu.memory_space<vmem>>, vector<1x1x16xf32>
    %23 = vector.shape_cast %22 : vector<1x1x16xf32> to vector<1x16xf32>
    %c4_18 = arith.constant 4 : index
    %c0_19 = arith.constant 0 : index
    %24 = vector.load %arg11[%c4_18, %c0_19] : memref<16x16xf32, #tpu.memory_space<vmem>>, vector<1x16xf32>
    tpu.vector_store %arg11[%c4_18, %c0_19], %23 {strides = array<i32>} : memref<16x16xf32, #tpu.memory_space<vmem>>, vector<1x16xf32>,
    %c5 = arith.constant 5 : index
    %25 = memref.load %arg0[%c5] : memref<16xi32, #tpu.memory_space<smem>>
    %26 = arith.index_cast %25 : i32 to index
    %c0_20 = arith.constant 0 : index
    %c0_21 = arith.constant 0 : index
    %27 = vector.load %arg1[%26, %c0_20, %c0_21] : memref<50x1x16xf32, #tpu.memory_space<vmem>>, vector<1x1x16xf32>
    %28 = vector.shape_cast %27 : vector<1x1x16xf32> to vector<1x16xf32>
    %c5_22 = arith.constant 5 : index
    %c0_23 = arith.constant 0 : index
    %29 = vector.load %arg11[%c5_22, %c0_23] : memref<16x16xf32, #tpu.memory_space<vmem>>, vector<1x16xf32>
    tpu.vector_store %arg11[%c5_22, %c0_23], %28 {strides = array<i32>} : memref<16x16xf32, #tpu.memory_space<vmem>>, vector<1x16xf32>,
    %c6 = arith.constant 6 : index
    %30 = memref.load %arg0[%c6] : memref<16xi32, #tpu.memory_space<smem>>
    %31 = arith.index_cast %30 : i32 to index
    %c0_24 = arith.constant 0 : index
    %c0_25 = arith.constant 0 : index
    %32 = vector.load %arg1[%31, %c0_24, %c0_25] : memref<50x1x16xf32, #tpu.memory_space<vmem>>, vector<1x1x16xf32>
    %33 = vector.shape_cast %32 : vector<1x1x16xf32> to vector<1x16xf32>
    %c6_26 = arith.constant 6 : index
    %c0_27 = arith.constant 0 : index
    %34 = vector.load %arg11[%c6_26, %c0_27] : memref<16x16xf32, #tpu.memory_space<vmem>>, vector<1x16xf32>
    tpu.vector_store %arg11[%c6_26, %c0_27], %33 {strides = array<i32>} : memref<16x16xf32, #tpu.memory_space<vmem>>, vector<1x16xf32>,
    %c7 = arith.constant 7 : index
    %35 = memref.load %arg0[%c7] : memref<16xi32, #tpu.memory_space<smem>>
    %36 = arith.index_cast %35 : i32 to index
    %c0_28 = arith.constant 0 : index
    %c0_29 = arith.constant 0 : index
    %37 = vector.load %arg1[%36, %c0_28, %c0_29] : memref<50x1x16xf32, #tpu.memory_space<vmem>>, vector<1x1x16xf32>
    %38 = vector.shape_cast %37 : vector<1x1x16xf32> to vector<1x16xf32>
    %c7_30 = arith.constant 7 : index
    %c0_31 = arith.constant 0 : index
    %39 = vector.load %arg11[%c7_30, %c0_31] : memref<16x16xf32, #tpu.memory_space<vmem>>, vector<1x16xf32>
    tpu.vector_store %arg11[%c7_30, %c0_31], %38 {strides = array<i32>} : memref<16x16xf32, #tpu.memory_space<vmem>>, vector<1x16xf32>,
    %c8 = arith.constant 8 : index
    %40 = memref.load %arg0[%c8] : memref<16xi32, #tpu.memory_space<smem>>
    %41 = arith.index_cast %40 : i32 to index
    %c0_32 = arith.constant 0 : index
    %c0_33 = arith.constant 0 : index
    %42 = vector.load %arg1[%41, %c0_32, %c0_33] : memref<50x1x16xf32, #tpu.memory_space<vmem>>, vector<1x1x16xf32>
    %43 = vector.shape_cast %42 : vector<1x1x16xf32> to vector<1x16xf32>
    %c8_34 = arith.constant 8 : index
    %c0_35 = arith.constant 0 : index
    %44 = vector.load %arg11[%c8_34, %c0_35] : memref<16x16xf32, #tpu.memory_space<vmem>>, vector<1x16xf32>
    tpu.vector_store %arg11[%c8_34, %c0_35], %43 {strides = array<i32>} : memref<16x16xf32, #tpu.memory_space<vmem>>, vector<1x16xf32>,
    %c9 = arith.constant 9 : index
    %45 = memref.load %arg0[%c9] : memref<16xi32, #tpu.memory_space<smem>>
    %46 = arith.index_cast %45 : i32 to index
    %c0_36 = arith.constant 0 : index
    %c0_37 = arith.constant 0 : index
    %47 = vector.load %arg1[%46, %c0_36, %c0_37] : memref<50x1x16xf32, #tpu.memory_space<vmem>>, vector<1x1x16xf32>
    %48 = vector.shape_cast %47 : vector<1x1x16xf32> to vector<1x16xf32>
    %c9_38 = arith.constant 9 : index
    %c0_39 = arith.constant 0 : index
    %49 = vector.load %arg11[%c9_38, %c0_39] : memref<16x16xf32, #tpu.memory_space<vmem>>, vector<1x16xf32>
    tpu.vector_store %arg11[%c9_38, %c0_39], %48 {strides = array<i32>} : memref<16x16xf32, #tpu.memory_space<vmem>>, vector<1x16xf32>,
    %c10 = arith.constant 10 : index
    %50 = memref.load %arg0[%c10] : memref<16xi32, #tpu.memory_space<smem>>
    %51 = arith.index_cast %50 : i32 to index
    %c0_40 = arith.constant 0 : index
    %c0_41 = arith.constant 0 : index
    %52 = vector.load %arg1[%51, %c0_40, %c0_41] : memref<50x1x16xf32, #tpu.memory_space<vmem>>, vector<1x1x16xf32>
    %53 = vector.shape_cast %52 : vector<1x1x16xf32> to vector<1x16xf32>
    %c10_42 = arith.constant 10 : index
    %c0_43 = arith.constant 0 : index
    %54 = vector.load %arg11[%c10_42, %c0_43] : memref<16x16xf32, #tpu.memory_space<vmem>>, vector<1x16xf32>
    tpu.vector_store %arg11[%c10_42, %c0_43], %53 {strides = array<i32>} : memref<16x16xf32, #tpu.memory_space<vmem>>, vector<1x16xf32>,
    %c11 = arith.constant 11 : index
    %55 = memref.load %arg0[%c11] : memref<16xi32, #tpu.memory_space<smem>>
    %56 = arith.index_cast %55 : i32 to index
    %c0_44 = arith.constant 0 : index
    %c0_45 = arith.constant 0 : index
    %57 = vector.load %arg1[%56, %c0_44, %c0_45] : memref<50x1x16xf32, #tpu.memory_space<vmem>>, vector<1x1x16xf32>
    %58 = vector.shape_cast %57 : vector<1x1x16xf32> to vector<1x16xf32>
    %c11_46 = arith.constant 11 : index
    %c0_47 = arith.constant 0 : index
    %59 = vector.load %arg11[%c11_46, %c0_47] : memref<16x16xf32, #tpu.memory_space<vmem>>, vector<1x16xf32>
    tpu.vector_store %arg11[%c11_46, %c0_47], %58 {strides = array<i32>} : memref<16x16xf32, #tpu.memory_space<vmem>>, vector<1x16xf32>,
    %c12 = arith.constant 12 : index
    %60 = memref.load %arg0[%c12] : memref<16xi32, #tpu.memory_space<smem>>
    %61 = arith.index_cast %60 : i32 to index
    %c0_48 = arith.constant 0 : index
    %c0_49 = arith.constant 0 : index
    %62 = vector.load %arg1[%61, %c0_48, %c0_49] : memref<50x1x16xf32, #tpu.memory_space<vmem>>, vector<1x1x16xf32>
    %63 = vector.shape_cast %62 : vector<1x1x16xf32> to vector<1x16xf32>
    %c12_50 = arith.constant 12 : index
    %c0_51 = arith.constant 0 : index
    %64 = vector.load %arg11[%c12_50, %c0_51] : memref<16x16xf32, #tpu.memory_space<vmem>>, vector<1x16xf32>
    tpu.vector_store %arg11[%c12_50, %c0_51], %63 {strides = array<i32>} : memref<16x16xf32, #tpu.memory_space<vmem>>, vector<1x16xf32>,
    %c13 = arith.constant 13 : index
    %65 = memref.load %arg0[%c13] : memref<16xi32, #tpu.memory_space<smem>>
    %66 = arith.index_cast %65 : i32 to index
    %c0_52 = arith.constant 0 : index
    %c0_53 = arith.constant 0 : index
    %67 = vector.load %arg1[%66, %c0_52, %c0_53] : memref<50x1x16xf32, #tpu.memory_space<vmem>>, vector<1x1x16xf32>
    %68 = vector.shape_cast %67 : vector<1x1x16xf32> to vector<1x16xf32>
    %c13_54 = arith.constant 13 : index
    %c0_55 = arith.constant 0 : index
    %69 = vector.load %arg11[%c13_54, %c0_55] : memref<16x16xf32, #tpu.memory_space<vmem>>, vector<1x16xf32>
    tpu.vector_store %arg11[%c13_54, %c0_55], %68 {strides = array<i32>} : memref<16x16xf32, #tpu.memory_space<vmem>>, vector<1x16xf32>,
    %c14 = arith.constant 14 : index
    %70 = memref.load %arg0[%c14] : memref<16xi32, #tpu.memory_space<smem>>
    %71 = arith.index_cast %70 : i32 to index
    %c0_56 = arith.constant 0 : index
    %c0_57 = arith.constant 0 : index
    %72 = vector.load %arg1[%71, %c0_56, %c0_57] : memref<50x1x16xf32, #tpu.memory_space<vmem>>, vector<1x1x16xf32>
    %73 = vector.shape_cast %72 : vector<1x1x16xf32> to vector<1x16xf32>
    %c14_58 = arith.constant 14 : index
    %c0_59 = arith.constant 0 : index
    %74 = vector.load %arg11[%c14_58, %c0_59] : memref<16x16xf32, #tpu.memory_space<vmem>>, vector<1x16xf32>
    tpu.vector_store %arg11[%c14_58, %c0_59], %73 {strides = array<i32>} : memref<16x16xf32, #tpu.memory_space<vmem>>, vector<1x16xf32>,
    %c15 = arith.constant 15 : index
    %75 = memref.load %arg0[%c15] : memref<16xi32, #tpu.memory_space<smem>>
    %76 = arith.index_cast %75 : i32 to index
    %c0_60 = arith.constant 0 : index
    %c0_61 = arith.constant 0 : index
    %77 = vector.load %arg1[%76, %c0_60, %c0_61] : memref<50x1x16xf32, #tpu.memory_space<vmem>>, vector<1x1x16xf32>
    %78 = vector.shape_cast %77 : vector<1x1x16xf32> to vector<1x16xf32>
    %c15_62 = arith.constant 15 : index
    %c0_63 = arith.constant 0 : index
    %79 = vector.load %arg11[%c15_62, %c0_63] : memref<16x16xf32, #tpu.memory_space<vmem>>, vector<1x16xf32>
    tpu.vector_store %arg11[%c15_62, %c0_63], %78 {strides = array<i32>} : memref<16x16xf32, #tpu.memory_space<vmem>>, vector<1x16xf32>,
    %c0_64 = arith.constant 0 : index
    %c0_65 = arith.constant 0 : index
    %80 = vector.load %arg11[%c0_64, %c0_65] : memref<16x16xf32, #tpu.memory_space<vmem>>, vector<16x16xf32>
    %c0_66 = arith.constant 0 : index
    %c0_67 = arith.constant 0 : index
    %81 = vector.load %arg2[%c0_66, %c0_67] : memref<16x32xf32, #tpu.memory_space<vmem>>, vector<16x32xf32>
    %cst = arith.constant dense<0.000000e+00> : vector<16x32xf32>
    %82 = tpu.matmul %80, %81, %cst {dimension_numbers = #tpu.dot_dimension_numbers<[1], [0], [0], [1], [0, 0, 1, 1], [], []>} : vector<16x16xf32>, vector<16x32xf32>, vector<16x32xf32> -> vector<16x32xf32>
    %c0_68 = arith.constant 0 : index
    %c0_69 = arith.constant 0 : index
    %83 = vector.load %arg4[%c0_68, %c0_69] : memref<1x32xf32, #tpu.memory_space<vmem>>, vector<1x32xf32>
    %84 = vector.broadcast %83 : vector<1x32xf32> to vector<16x32xf32>
    %85 = arith.addf %82, %84 : vector<16x32xf32>
    %c0_70 = arith.constant 0 : index
    %c0_71 = arith.constant 0 : index
    %86 = vector.load %arg3[%c0_70, %c0_71] : memref<32x32xf32, #tpu.memory_space<vmem>>, vector<32x32xf32>
    %cst_72 = arith.constant 0.000000e+00 : f32
    %87 = vector.broadcast %cst_72 : f32 to vector<2x32xf32>
    %88 = vector.extract_strided_slice %85 {offsets = [0, 0], sizes = [2, 32], strides = [1, 1]} : vector<16x32xf32> to vector<2x32xf32>
    %cst_73 = arith.constant dense<0.000000e+00> : vector<2x32xf32>
    %89 = tpu.matmul %87, %86, %cst_73 {dimension_numbers = #tpu.dot_dimension_numbers<[1], [0], [0], [1], [0, 0, 1, 1], [], []>} : vector<2x32xf32>, vector<32x32xf32>, vector<2x32xf32> -> vector<2x32xf32>
    %90 = arith.addf %88, %89 : vector<2x32xf32>
    %91 = math.tanh %90 : vector<2x32xf32>
    %c0_74 = arith.constant 0 : index
    %c0_75 = arith.constant 0 : index
    %c0_76 = arith.constant 0 : index
    %92 = vector.load %arg9[%c0_74, %c0_75, %c0_76] : memref<8x2x32xf32, #tpu.memory_space<vmem>>, vector<1x2x32xf32>
    %93 = vector.shape_cast %92 : vector<1x2x32xf32> to vector<2x32xf32>
    %94 = vector.shape_cast %91 : vector<2x32xf32> to vector<1x2x32xf32>
    tpu.vector_store %arg9[%c0_74, %c0_75, %c0_76], %94 {strides = array<i32>} : memref<8x2x32xf32, #tpu.memory_space<vmem>>, vector<1x2x32xf32>,
    %95 = vector.extract_strided_slice %85 {offsets = [2, 0], sizes = [2, 32], strides = [1, 1]} : vector<16x32xf32> to vector<2x32xf32>
    %cst_77 = arith.constant dense<0.000000e+00> : vector<2x32xf32>
    %96 = tpu.matmul %91, %86, %cst_77 {dimension_numbers = #tpu.dot_dimension_numbers<[1], [0], [0], [1], [0, 0, 1, 1], [], []>} : vector<2x32xf32>, vector<32x32xf32>, vector<2x32xf32> -> vector<2x32xf32>
    %97 = arith.addf %95, %96 : vector<2x32xf32>
    %98 = math.tanh %97 : vector<2x32xf32>
    %c1_78 = arith.constant 1 : index
    %c0_79 = arith.constant 0 : index
    %c0_80 = arith.constant 0 : index
    %99 = vector.load %arg9[%c1_78, %c0_79, %c0_80] : memref<8x2x32xf32, #tpu.memory_space<vmem>>, vector<1x2x32xf32>
    %100 = vector.shape_cast %99 : vector<1x2x32xf32> to vector<2x32xf32>
    %101 = vector.shape_cast %98 : vector<2x32xf32> to vector<1x2x32xf32>
    tpu.vector_store %arg9[%c1_78, %c0_79, %c0_80], %101 {strides = array<i32>} : memref<8x2x32xf32, #tpu.memory_space<vmem>>, vector<1x2x32xf32>,
    %102 = vector.extract_strided_slice %85 {offsets = [4, 0], sizes = [2, 32], strides = [1, 1]} : vector<16x32xf32> to vector<2x32xf32>
    %cst_81 = arith.constant dense<0.000000e+00> : vector<2x32xf32>
    %103 = tpu.matmul %98, %86, %cst_81 {dimension_numbers = #tpu.dot_dimension_numbers<[1], [0], [0], [1], [0, 0, 1, 1], [], []>} : vector<2x32xf32>, vector<32x32xf32>, vector<2x32xf32> -> vector<2x32xf32>
    %104 = arith.addf %102, %103 : vector<2x32xf32>
    %105 = math.tanh %104 : vector<2x32xf32>
    %c2_82 = arith.constant 2 : index
    %c0_83 = arith.constant 0 : index
    %c0_84 = arith.constant 0 : index
    %106 = vector.load %arg9[%c2_82, %c0_83, %c0_84] : memref<8x2x32xf32, #tpu.memory_space<vmem>>, vector<1x2x32xf32>
    %107 = vector.shape_cast %106 : vector<1x2x32xf32> to vector<2x32xf32>
    %108 = vector.shape_cast %105 : vector<2x32xf32> to vector<1x2x32xf32>
    tpu.vector_store %arg9[%c2_82, %c0_83, %c0_84], %108 {strides = array<i32>} : memref<8x2x32xf32, #tpu.memory_space<vmem>>, vector<1x2x32xf32>,
    %109 = vector.extract_strided_slice %85 {offsets = [6, 0], sizes = [2, 32], strides = [1, 1]} : vector<16x32xf32> to vector<2x32xf32>
    %cst_85 = arith.constant dense<0.000000e+00> : vector<2x32xf32>
    %110 = tpu.matmul %105, %86, %cst_85 {dimension_numbers = #tpu.dot_dimension_numbers<[1], [0], [0], [1], [0, 0, 1, 1], [], []>} : vector<2x32xf32>, vector<32x32xf32>, vector<2x32xf32> -> vector<2x32xf32>
    %111 = arith.addf %109, %110 : vector<2x32xf32>
    %112 = math.tanh %111 : vector<2x32xf32>
    %c3_86 = arith.constant 3 : index
    %c0_87 = arith.constant 0 : index
    %c0_88 = arith.constant 0 : index
    %113 = vector.load %arg9[%c3_86, %c0_87, %c0_88] : memref<8x2x32xf32, #tpu.memory_space<vmem>>, vector<1x2x32xf32>
    %114 = vector.shape_cast %113 : vector<1x2x32xf32> to vector<2x32xf32>
    %115 = vector.shape_cast %112 : vector<2x32xf32> to vector<1x2x32xf32>
    tpu.vector_store %arg9[%c3_86, %c0_87, %c0_88], %115 {strides = array<i32>} : memref<8x2x32xf32, #tpu.memory_space<vmem>>, vector<1x2x32xf32>,
    %116 = vector.extract_strided_slice %85 {offsets = [8, 0], sizes = [2, 32], strides = [1, 1]} : vector<16x32xf32> to vector<2x32xf32>
    %cst_89 = arith.constant dense<0.000000e+00> : vector<2x32xf32>
    %117 = tpu.matmul %112, %86, %cst_89 {dimension_numbers = #tpu.dot_dimension_numbers<[1], [0], [0], [1], [0, 0, 1, 1], [], []>} : vector<2x32xf32>, vector<32x32xf32>, vector<2x32xf32> -> vector<2x32xf32>
    %118 = arith.addf %116, %117 : vector<2x32xf32>
    %119 = math.tanh %118 : vector<2x32xf32>
    %c4_90 = arith.constant 4 : index
    %c0_91 = arith.constant 0 : index
    %c0_92 = arith.constant 0 : index
    %120 = vector.load %arg9[%c4_90, %c0_91, %c0_92] : memref<8x2x32xf32, #tpu.memory_space<vmem>>, vector<1x2x32xf32>
    %121 = vector.shape_cast %120 : vector<1x2x32xf32> to vector<2x32xf32>
    %122 = vector.shape_cast %119 : vector<2x32xf32> to vector<1x2x32xf32>
    tpu.vector_store %arg9[%c4_90, %c0_91, %c0_92], %122 {strides = array<i32>} : memref<8x2x32xf32, #tpu.memory_space<vmem>>, vector<1x2x32xf32>,
    %123 = vector.extract_strided_slice %85 {offsets = [10, 0], sizes = [2, 32], strides = [1, 1]} : vector<16x32xf32> to vector<2x32xf32>
    %cst_93 = arith.constant dense<0.000000e+00> : vector<2x32xf32>
    %124 = tpu.matmul %119, %86, %cst_93 {dimension_numbers = #tpu.dot_dimension_numbers<[1], [0], [0], [1], [0, 0, 1, 1], [], []>} : vector<2x32xf32>, vector<32x32xf32>, vector<2x32xf32> -> vector<2x32xf32>
    %125 = arith.addf %123, %124 : vector<2x32xf32>
    %126 = math.tanh %125 : vector<2x32xf32>
    %c5_94 = arith.constant 5 : index
    %c0_95 = arith.constant 0 : index
    %c0_96 = arith.constant 0 : index
    %127 = vector.load %arg9[%c5_94, %c0_95, %c0_96] : memref<8x2x32xf32, #tpu.memory_space<vmem>>, vector<1x2x32xf32>
    %128 = vector.shape_cast %127 : vector<1x2x32xf32> to vector<2x32xf32>
    %129 = vector.shape_cast %126 : vector<2x32xf32> to vector<1x2x32xf32>
    tpu.vector_store %arg9[%c5_94, %c0_95, %c0_96], %129 {strides = array<i32>} : memref<8x2x32xf32, #tpu.memory_space<vmem>>, vector<1x2x32xf32>,
    %130 = vector.extract_strided_slice %85 {offsets = [12, 0], sizes = [2, 32], strides = [1, 1]} : vector<16x32xf32> to vector<2x32xf32>
    %cst_97 = arith.constant dense<0.000000e+00> : vector<2x32xf32>
    %131 = tpu.matmul %126, %86, %cst_97 {dimension_numbers = #tpu.dot_dimension_numbers<[1], [0], [0], [1], [0, 0, 1, 1], [], []>} : vector<2x32xf32>, vector<32x32xf32>, vector<2x32xf32> -> vector<2x32xf32>
    %132 = arith.addf %130, %131 : vector<2x32xf32>
    %133 = math.tanh %132 : vector<2x32xf32>
    %c6_98 = arith.constant 6 : index
    %c0_99 = arith.constant 0 : index
    %c0_100 = arith.constant 0 : index
    %134 = vector.load %arg9[%c6_98, %c0_99, %c0_100] : memref<8x2x32xf32, #tpu.memory_space<vmem>>, vector<1x2x32xf32>
    %135 = vector.shape_cast %134 : vector<1x2x32xf32> to vector<2x32xf32>
    %136 = vector.shape_cast %133 : vector<2x32xf32> to vector<1x2x32xf32>
    tpu.vector_store %arg9[%c6_98, %c0_99, %c0_100], %136 {strides = array<i32>} : memref<8x2x32xf32, #tpu.memory_space<vmem>>, vector<1x2x32xf32>,
    %137 = vector.extract_strided_slice %85 {offsets = [14, 0], sizes = [2, 32], strides = [1, 1]} : vector<16x32xf32> to vector<2x32xf32>
    %cst_101 = arith.constant dense<0.000000e+00> : vector<2x32xf32>
    %138 = tpu.matmul %133, %86, %cst_101 {dimension_numbers = #tpu.dot_dimension_numbers<[1], [0], [0], [1], [0, 0, 1, 1], [], []>} : vector<2x32xf32>, vector<32x32xf32>, vector<2x32xf32> -> vector<2x32xf32>
    %139 = arith.addf %137, %138 : vector<2x32xf32>
    %140 = math.tanh %139 : vector<2x32xf32>
    %c7_102 = arith.constant 7 : index
    %c0_103 = arith.constant 0 : index
    %c0_104 = arith.constant 0 : index
    %141 = vector.load %arg9[%c7_102, %c0_103, %c0_104] : memref<8x2x32xf32, #tpu.memory_space<vmem>>, vector<1x2x32xf32>
    %142 = vector.shape_cast %141 : vector<1x2x32xf32> to vector<2x32xf32>
    %143 = vector.shape_cast %140 : vector<2x32xf32> to vector<1x2x32xf32>
    tpu.vector_store %arg9[%c7_102, %c0_103, %c0_104], %143 {strides = array<i32>} : memref<8x2x32xf32, #tpu.memory_space<vmem>>, vector<1x2x32xf32>,
    %c0_105 = arith.constant 0 : index
    %c0_106 = arith.constant 0 : index
    %144 = vector.load %arg5[%c0_105, %c0_106] : memref<32x24xf32, #tpu.memory_space<vmem>>, vector<32x24xf32>
    %cst_107 = arith.constant dense<0.000000e+00> : vector<2x24xf32>
    %145 = tpu.matmul %140, %144, %cst_107 {dimension_numbers = #tpu.dot_dimension_numbers<[1], [0], [0], [1], [0, 0, 1, 1], [], []>} : vector<2x32xf32>, vector<32x24xf32>, vector<2x24xf32> -> vector<2x24xf32>
    %c0_108 = arith.constant 0 : index
    %c0_109 = arith.constant 0 : index
    %146 = vector.load %arg6[%c0_108, %c0_109] : memref<1x24xf32, #tpu.memory_space<vmem>>, vector<1x24xf32>
    %147 = vector.broadcast %146 : vector<1x24xf32> to vector<2x24xf32>
    %148 = arith.addf %145, %147 : vector<2x24xf32>
    %149 = math.tanh %148 : vector<2x24xf32>
    %c0_110 = arith.constant 0 : index
    %c0_111 = arith.constant 0 : index
    %150 = vector.load %arg7[%c0_110, %c0_111] : memref<24x8xf32, #tpu.memory_space<vmem>>, vector<24x8xf32>
    %cst_112 = arith.constant dense<0.000000e+00> : vector<2x8xf32>
    %151 = tpu.matmul %149, %150, %cst_112 {dimension_numbers = #tpu.dot_dimension_numbers<[1], [0], [0], [1], [0, 0, 1, 1], [], []>} : vector<2x24xf32>, vector<24x8xf32>, vector<2x8xf32> -> vector<2x8xf32>
    %c0_113 = arith.constant 0 : index
    %c0_114 = arith.constant 0 : index
    %152 = vector.load %arg8[%c0_113, %c0_114] : memref<1x8xf32, #tpu.memory_space<vmem>>, vector<1x8xf32>
    %153 = vector.broadcast %152 : vector<1x8xf32> to vector<2x8xf32>
    %154 = arith.addf %151, %153 : vector<2x8xf32>
    %c0_115 = arith.constant 0 : index
    %c0_116 = arith.constant 0 : index
    %155 = vector.load %arg10[%c0_115, %c0_116] : memref<2x8xf32, #tpu.memory_space<vmem>>, vector<2x8xf32>
    tpu.vector_store %arg10[%c0_115, %c0_116], %154 {strides = array<i32>} : memref<2x8xf32, #tpu.memory_space<vmem>>, vector<2x8xf32>,
    return
  }
}

</mosaic_0001>

<llo_original>
// kernel: tpu_custom_call.1
$region0: #{tpu_custom_call.1}
  #allocation0 [shape = 'u32[]', space=smem, size = 0x4, offset = 0x4, fixed_abs, tag = 'smem constant byte address 0x4 - core index']
  #allocation1 [shape = 'u32[144,128]{1,0:T(1,128)}', space=vmem, size = 0x12000, scoped, tag = 'internal scratch']
  #allocation2 [shape = 'f32[16,16]{1,0:T(8,128)}', space=vmem, size = 0x2000, scoped, tag = 'scratch operand']
  %s0 = inlined_call_operand.vmem [shape: s32[16], index: 0, kind: input, shape index: {}]
  %s1 = inlined_call_operand.vmem [shape: f32[50,1,16], index: 1, kind: input, shape index: {}]
  %s2 = inlined_call_operand.vmem [shape: f32[16,32], index: 2, kind: input, shape index: {}]
  %s3 = inlined_call_operand.vmem [shape: f32[32,32], index: 3, kind: input, shape index: {}]
  %s4 = inlined_call_operand.vmem [shape: f32[1,32], index: 4, kind: input, shape index: {}]
  %s5 = inlined_call_operand.vmem [shape: f32[32,24], index: 5, kind: input, shape index: {}]
  %s6 = inlined_call_operand.vmem [shape: f32[1,24], index: 6, kind: input, shape index: {}]
  %s7 = inlined_call_operand.vmem [shape: f32[24,8], index: 7, kind: input, shape index: {}]
  %s8 = inlined_call_operand.vmem [shape: f32[1,8], index: 8, kind: input, shape index: {}]
  %s9 = inlined_call_operand.hbm [shape: f32[8,2,32], index: 9, kind: output, shape index: {0}]
  %s10 = inlined_call_operand.hbm [shape: f32[2,8], index: 10, kind: output, shape index: {1}]
  %11 = xla_tuple %s9, %s10
  %s12 = sld [smem:[#allocation0]]
  $region58: #{tpu_custom_call.1} parent=0
    _
  %s14 = ssub.s32 1, %s12
  %s15 = scalar_select 0, %s14, %s12
  $region1: #{tpu_custom_call.1} parent=0
    #allocation3 [shape = 'u8[512]{0}', space=smem, size = 0x200, scoped, tag = 'input window, operand 0, single buffered']
    #allocation4 [shape = 's32[1]{0}', space=sflag, size = 0x4, scoped, tag = 'scoped memory for tpu_custom_call.1']
    #allocation5 [shape = 's32[1]{0}', space=sflag, size = 0x4, scoped, tag = 'scoped memory for tpu_custom_call.1']
    #allocation6 [shape = 'u8[8192]{0}', space=vmem, size = 0x2000, scoped, tag = 'output window, operand 0, single buffered']
    #allocation7 [shape = 'u8[1024]{0}', space=vmem, size = 0x400, scoped, tag = 'output window, operand 1, single buffered']
    #allocation8 [shape = 's32[1]{0}', space=sflag, size = 0x4, scoped, tag = 'scoped memory for tpu_custom_call.1']
    %16 = vsyncpa [#allocation5], 0
    %17 = vsyncpa [#allocation4], 0
    %18 = vsyncpa [#allocation8], 0
    // Predicated region
    $region2: #{tpu_custom_call.1} parent=1 // pred_check
      _
    $region3: #{tpu_custom_call.1} parent=1 // pred_check_branch
      %20 = sbr.rel (0) target = $region5
    $region4: #{tpu_custom_call.1} parent=1 // pred_region
      %s22 = ssub.s32 16, 16
      %23 = vsyncadd [#allocation5], %s22
      %s25 = sshll.u32 %s0, 4
      %s26 = int_to_ptr.vmem [resolvable:$true] %s25
      %28 = dma.vmem_to_smem %s26, 16, [#allocation3], [#allocation5]
    $region5: #{tpu_custom_call.1} parent=1 // pred_fallthru
      _
    // Predicated region
    $region6: #{tpu_custom_call.1} parent=1 // pred_check
      _
    $region7: #{tpu_custom_call.1} parent=1 // pred_check_branch
      %30 = sbr.rel (0) target = $region9
    $region8: #{tpu_custom_call.1} parent=1 // pred_region
      _
    $region9: #{tpu_custom_call.1} parent=1 // pred_fallthru
      _
    // Predicated region
    $region10: #{tpu_custom_call.1} parent=1 // pred_check
      _
    $region11: #{tpu_custom_call.1} parent=1 // pred_check_branch
      %32 = sbr.rel (0) target = $region13
    $region12: #{tpu_custom_call.1} parent=1 // pred_region
      _
    $region13: #{tpu_custom_call.1} parent=1 // pred_fallthru
      _
    // Predicated region
    $region14: #{tpu_custom_call.1} parent=1 // pred_check
      _
    $region15: #{tpu_custom_call.1} parent=1 // pred_check_branch
      %34 = sbr.rel (0) target = $region17
    $region16: #{tpu_custom_call.1} parent=1 // pred_region
      _
    $region17: #{tpu_custom_call.1} parent=1 // pred_fallthru
      _
    // Predicated region
    $region18: #{tpu_custom_call.1} parent=1 // pred_check
      _
    $region19: #{tpu_custom_call.1} parent=1 // pred_check_branch
      %36 = sbr.rel (0) target = $region21
    $region20: #{tpu_custom_call.1} parent=1 // pred_region
      _
    $region21: #{tpu_custom_call.1} parent=1 // pred_fallthru
      _
    // Predicated region
    $region22: #{tpu_custom_call.1} parent=1 // pred_check
      _
    $region23: #{tpu_custom_call.1} parent=1 // pred_check_branch
      %38 = sbr.rel (0) target = $region25
    $region24: #{tpu_custom_call.1} parent=1 // pred_region
      _
    $region25: #{tpu_custom_call.1} parent=1 // pred_fallthru
      _
    // Predicated region
    $region26: #{tpu_custom_call.1} parent=1 // pred_check
      _
    $region27: #{tpu_custom_call.1} parent=1 // pred_check_branch
      %40 = sbr.rel (0) target = $region29
    $region28: #{tpu_custom_call.1} parent=1 // pred_region
      _
    $region29: #{tpu_custom_call.1} parent=1 // pred_fallthru
      _
    // Predicated region
    $region30: #{tpu_custom_call.1} parent=1 // pred_check
      _
    $region31: #{tpu_custom_call.1} parent=1 // pred_check_branch
      %42 = sbr.rel (0) target = $region33
    $region32: #{tpu_custom_call.1} parent=1 // pred_region
      _
    $region33: #{tpu_custom_call.1} parent=1 // pred_fallthru
      _
    // Predicated region
    $region34: #{tpu_custom_call.1} parent=1 // pred_check
      _
    $region35: #{tpu_custom_call.1} parent=1 // pred_check_branch
      %44 = sbr.rel (0) target = $region37
    $region36: #{tpu_custom_call.1} parent=1 // pred_region
      _
    $region37: #{tpu_custom_call.1} parent=1 // pred_fallthru
      _
    // Predicated region
    $region38: #{tpu_custom_call.1} parent=1 // pred_check
      _
    $region39: #{tpu_custom_call.1} parent=1 // pred_check_branch
      %46 = sbr.rel (0) target = $region41
    $region40: #{tpu_custom_call.1} parent=1 // pred_region
      %47 = dma.done [#allocation5], 16
    $region41: #{tpu_custom_call.1} parent=1 // pred_fallthru
      _
    %48 = sfence
    %s49 = sld [smem:[#allocation3]]
    %s50 = scalar_lea.vmem %s1, %s49
    %v51 = vld [vmem:[%s50] sm:$0x1]
    %vm52 = vcmask 122880
    %53 = vst.msk [vmem:[#allocation2] sm:$0x1] %vm52, %v51
    %s54 = sld [smem:[#allocation3 + $0x1]]
    %s55 = scalar_lea.vmem %s1, %s54
    %v56 = vld [vmem:[%s55] sm:$0x1]
    %57 = vst.msk [vmem:[#allocation2 + $0x1] sm:$0x1] %vm52, %v56
    %s58 = sld [smem:[#allocation3 + $0x2]]
    %s59 = scalar_lea.vmem %s1, %s58
    %v60 = vld [vmem:[%s59] sm:$0x1]
    %61 = vst.msk [vmem:[#allocation2 + $0x2] sm:$0x1] %vm52, %v60
    %s62 = sld [smem:[#allocation3 + $0x3]]
    %s63 = scalar_lea.vmem %s1, %s62
    %v64 = vld [vmem:[%s63] sm:$0x1]
    %65 = vst.msk [vmem:[#allocation2 + $0x3] sm:$0x1] %vm52, %v64
    %s66 = sld [smem:[#allocation3 + $0x4]]
    %s67 = scalar_lea.vmem %s1, %s66
    %v68 = vld [vmem:[%s67] sm:$0x1]
    %69 = vst.msk [vmem:[#allocation2 + $0x4] sm:$0x1] %vm52, %v68
    %s70 = sld [smem:[#allocation3 + $0x5]]
    %s71 = scalar_lea.vmem %s1, %s70
    %v72 = vld [vmem:[%s71] sm:$0x1]
    %73 = vst.msk [vmem:[#allocation2 + $0x5] sm:$0x1] %vm52, %v72
    %s74 = sld [smem:[#allocation3 + $0x6]]
    %s75 = scalar_lea.vmem %s1, %s74
    %v76 = vld [vmem:[%s75] sm:$0x1]
    %77 = vst.msk [vmem:[#allocation2 + $0x6] sm:$0x1] %vm52, %v76
    %s78 = sld [smem:[#allocation3 + $0x7]]
    %s79 = scalar_lea.vmem %s1, %s78
    %v80 = vld [vmem:[%s79] sm:$0x1]
    %81 = vst.msk [vmem:[#allocation2 + $0x7] sm:$0x1] %vm52, %v80
    %s82 = sld [smem:[#allocation3 + $0x8]]
    %s83 = scalar_lea.vmem %s1, %s82
    %v84 = vld [vmem:[%s83] sm:$0x1]
    %85 = vst.msk [vmem:[#allocation2 + $0x8] sm:$0x1] %vm52, %v84
    %s86 = sld [smem:[#allocation3 + $0x9]]
    %s87 = scalar_lea.vmem %s1, %s86
    %v88 = vld [vmem:[%s87] sm:$0x1]
    %89 = vst.msk [vmem:[#allocation2 + $0x9] sm:$0x1] %vm52, %v88
    %s90 = sld [smem:[#allocation3 + $0xa]]
    %s91 = scalar_lea.vmem %s1, %s90
    %v92 = vld [vmem:[%s91] sm:$0x1]
    %93 = vst.msk [vmem:[#allocation2 + $0xa] sm:$0x1] %vm52, %v92
    %s94 = sld [smem:[#allocation3 + $0xb]]
    %s95 = scalar_lea.vmem %s1, %s94
    %v96 = vld [vmem:[%s95] sm:$0x1]
    %97 = vst.msk [vmem:[#allocation2 + $0xb] sm:$0x1] %vm52, %v96
    %s98 = sld [smem:[#allocation3 + $0xc]]
    %s99 = scalar_lea.vmem %s1, %s98
    %v100 = vld [vmem:[%s99] sm:$0x1]
    %101 = vst.msk [vmem:[#allocation2 + $0xc] sm:$0x1] %vm52, %v100
    %s102 = sld [smem:[#allocation3 + $0xd]]
    %s103 = scalar_lea.vmem %s1, %s102
    %v104 = vld [vmem:[%s103] sm:$0x1]
    %105 = vst.msk [vmem:[#allocation2 + $0xd] sm:$0x1] %vm52, %v104
    %s106 = sld [smem:[#allocation3 + $0xe]]
    %s107 = scalar_lea.vmem %s1, %s106
    %v108 = vld [vmem:[%s107] sm:$0x1]
    %109 = vst.msk [vmem:[#allocation2 + $0xe] sm:$0x1] %vm52, %v108
    %s110 = sld [smem:[#allocation3 + $0xf]]
    %s111 = scalar_lea.vmem %s1, %s110
    %v112 = vld [vmem:[%s111] sm:$0x1]
    %113 = vst.msk [vmem:[#allocation2 + $0xf] sm:$0x1] %vm52, %v112
    %v114 = vld [vmem:[#allocation2] sm:$0xff]
    %v115 = vld [vmem:[#allocation2 + $0x8] sm:$0xff]
    %v116 = vld [vmem:[%s2] sm:$0xff]
    %v117 = vld [vmem:[%s2 + $0x8] sm:$0xff]
    %v118 = vld [vmem:[%s4] sm:$0x1]
    %v120 = vlaneseq
    %v121 = vshrl.u32 %v120, 7
    %v122 = vsub.s32 0, %v121
    %v123 = vrot.slane %v118, %v122
    %vm125 = vcmask 130048
    %v127 = vsel %vm125, %v114, 0
    %v130 = vsel %vm125, %v115, 0
    %132 = vmatprep.subr.mxu0 0.0
    %133 = vmatpush1.msra.mxu0 0.0
    %134 = vmatprep.subr.mxu0 0.0
    %135 = vmatpush1.msra.mxu0 0.0
    %136 = vmatprep.subr.mxu0 0.0
    %137 = vmatpush1.msra.mxu0 0.0
    %138 = vmatprep.subr.mxu0 0.0
    %139 = vmatpush1.msra.mxu0 0.0
    %140 = vmatprep.subr.mxu0 0.0
    %141 = vmatpush1.msra.mxu0 0.0
    %142 = vmatprep.subr.mxu0 0.0
    %143 = vmatpush1.msra.mxu0 0.0
    %144 = vmatprep.subr.mxu0 0.0
    %145 = vmatpush1.msra.mxu0 0.0
    %146 = vmatprep.subr.mxu0 0.0
    %147 = vmatpush1.msra.mxu0 0.0
    %148 = vmatprep.subr.mxu0 0.0
    %149 = vmatpush1.msra.mxu0 0.0
    %150 = vmatprep.subr.mxu0 0.0
    %151 = vmatpush1.msra.mxu0 0.0
    %152 = vmatprep.subr.mxu0 0.0
    %153 = vmatpush1.msra.mxu0 0.0
    %154 = vmatprep.subr.mxu0 0.0
    %155 = vmatpush1.msra.mxu0 0.0
    %156 = vmatprep.subr.mxu0 0.0
    %157 = vmatpush1.msra.mxu0 0.0
    %158 = vmatprep.subr.mxu0 0.0
    %159 = vmatpush1.msra.mxu0 0.0
    %160 = vmatprep.subr.mxu0 0.0
    %161 = vmatpush1.msra.mxu0 %v117
    %162 = vmatprep.subr.mxu0 0.0
    %163 = vmatpush1.msra.mxu0 %v116
    %164 = vmatprep.subr.mxu0 0.0
    %165 = vmatpush2.msra.mxu0 0.0
    %166 = vmatprep.subr.mxu0 0.0
    %167 = vmatpush2.msra.mxu0 0.0
    %168 = vmatprep.subr.mxu0 0.0
    %169 = vmatpush2.msra.mxu0 0.0
    %170 = vmatprep.subr.mxu0 0.0
    %171 = vmatpush2.msra.mxu0 0.0
    %172 = vmatprep.subr.mxu0 0.0
    %173 = vmatpush2.msra.mxu0 0.0
    %174 = vmatprep.subr.mxu0 0.0
    %175 = vmatpush2.msra.mxu0 0.0
    %176 = vmatprep.subr.mxu0 0.0
    %177 = vmatpush2.msra.mxu0 0.0
    %178 = vmatprep.subr.mxu0 0.0
    %179 = vmatpush2.msra.mxu0 0.0
    %180 = vmatprep.subr.mxu0 0.0
    %181 = vmatpush2.msra.mxu0 0.0
    %182 = vmatprep.subr.mxu0 0.0
    %183 = vmatpush2.msra.mxu0 0.0
    %184 = vmatprep.subr.mxu0 0.0
    %185 = vmatpush2.msra.mxu0 0.0
    %186 = vmatprep.subr.mxu0 0.0
    %187 = vmatpush2.msra.mxu0 0.0
    %188 = vmatprep.subr.mxu0 0.0
    %189 = vmatpush2.msra.mxu0 0.0
    %190 = vmatprep.subr.mxu0 0.0
    %191 = vmatpush2.msra.mxu0 0.0
    %192 = vmatprep.subr.mxu0 0.0
    %193 = vmatpush2.msra.mxu0 0.0
    %194 = vmatprep.subr.mxu0 0.0
    %195 = vmatpush2.msra.mxu0 0.0
    %196 = vmatprep.mubr.f32.mxu0 0.0
    %197 = vmatmul.mubr.f32.gmra.mxu0 %v127
    %v198 = vpop.f32.mrf.mxu0
    %v199 = vadd.f32 %v123, %v198
    %v200 = vpop.f32.mrf.mxu0
    %201 = vmatprep.mubr.f32.mxu0 0.0
    %202 = vmatmul.mubr.f32.gmra.mxu0 %v130
    %v203 = vpop.f32.mrf.mxu0
    %v204 = vadd.f32 %v123, %v203
    %v205 = vpop.f32.mrf.mxu0
    %206 = vdwg.mxu0
    %v207 = vld [vmem:[%s3] sm:$0xff]
    %v208 = vld [vmem:[%s3 + $0x8] sm:$0xff]
    %v209 = vld [vmem:[%s3 + $0x10] sm:$0xff]
    %v210 = vld [vmem:[%s3 + $0x18] sm:$0xff]
    %vm211 = vcmask 261120
    %v213 = vsel %vm211, 0.0, 0
    %215 = vmatprep.subr.mxu0 0.0
    %216 = vmatpush1.msra.mxu0 0.0
    %217 = vmatprep.subr.mxu0 0.0
    %218 = vmatpush1.msra.mxu0 0.0
    %219 = vmatprep.subr.mxu0 0.0
    %220 = vmatpush1.msra.mxu0 0.0
    %221 = vmatprep.subr.mxu0 0.0
    %222 = vmatpush1.msra.mxu0 0.0
    %223 = vmatprep.subr.mxu0 0.0
    %224 = vmatpush1.msra.mxu0 0.0
    %225 = vmatprep.subr.mxu0 0.0
    %226 = vmatpush1.msra.mxu0 0.0
    %227 = vmatprep.subr.mxu0 0.0
    %228 = vmatpush1.msra.mxu0 0.0
    %229 = vmatprep.subr.mxu0 0.0
    %230 = vmatpush1.msra.mxu0 0.0
    %231 = vmatprep.subr.mxu0 0.0
    %232 = vmatpush1.msra.mxu0 0.0
    %233 = vmatprep.subr.mxu0 0.0
    %234 = vmatpush1.msra.mxu0 0.0
    %235 = vmatprep.subr.mxu0 0.0
    %236 = vmatpush1.msra.mxu0 0.0
    %237 = vmatprep.subr.mxu0 0.0
    %238 = vmatpush1.msra.mxu0 0.0
    %239 = vmatprep.subr.mxu0 0.0
    %240 = vmatpush1.msra.mxu0 %v210
    %241 = vmatprep.subr.mxu0 0.0
    %242 = vmatpush1.msra.mxu0 %v209
    %243 = vmatprep.subr.mxu0 0.0
    %244 = vmatpush1.msra.mxu0 %v208
    %245 = vmatprep.subr.mxu0 0.0
    %246 = vmatpush1.msra.mxu0 %v207
    %247 = vmatprep.subr.mxu0 0.0
    %248 = vmatpush2.msra.mxu0 0.0
    %249 = vmatprep.subr.mxu0 0.0
    %250 = vmatpush2.msra.mxu0 0.0
    %251 = vmatprep.subr.mxu0 0.0
    %252 = vmatpush2.msra.mxu0 0.0
    %253 = vmatprep.subr.mxu0 0.0
    %254 = vmatpush2.msra.mxu0 0.0
    %255 = vmatprep.subr.mxu0 0.0
    %256 = vmatpush2.msra.mxu0 0.0
    %257 = vmatprep.subr.mxu0 0.0
    %258 = vmatpush2.msra.mxu0 0.0
    %259 = vmatprep.subr.mxu0 0.0
    %260 = vmatpush2.msra.mxu0 0.0
    %261 = vmatprep.subr.mxu0 0.0
    %262 = vmatpush2.msra.mxu0 0.0
    %263 = vmatprep.subr.mxu0 0.0
    %264 = vmatpush2.msra.mxu0 0.0
    %265 = vmatprep.subr.mxu0 0.0
    %266 = vmatpush2.msra.mxu0 0.0
    %267 = vmatprep.subr.mxu0 0.0
    %268 = vmatpush2.msra.mxu0 0.0
    %269 = vmatprep.subr.mxu0 0.0
    %270 = vmatpush2.msra.mxu0 0.0
    %271 = vmatprep.subr.mxu0 0.0
    %272 = vmatpush2.msra.mxu0 0.0
    %273 = vmatprep.subr.mxu0 0.0
    %274 = vmatpush2.msra.mxu0 0.0
    %275 = vmatprep.subr.mxu0 0.0
    %276 = vmatpush2.msra.mxu0 0.0
    %277 = vmatprep.subr.mxu0 0.0
    %278 = vmatpush2.msra.mxu0 0.0
    %279 = vmatprep.mubr.f32.mxu0 0.0
    %280 = vmatmul.mubr.f32.gmra.mxu0 %v213
    %v281 = vpop.f32.mrf.mxu0
    %v282 = vadd.f32 0.0, %v281
    %v283 = vpop.f32.mrf.mxu0
    %284 = vdwg.mxu0
    %v285 = vadd.f32 %v199, %v282
    %v286 = vtanh.pop %v285
    %vm287 = vcmask 254976
    %288 = vst.msk [vmem:[#allocation6] sm:$0x3] %vm287, %v286
    %v290 = vsel %vm211, %v286, 0
    %292 = vmatprep.subr.mxu0 0.0
    %293 = vmatpush1.msra.mxu0 0.0
    %294 = vmatprep.subr.mxu0 0.0
    %295 = vmatpush1.msra.mxu0 0.0
    %296 = vmatprep.subr.mxu0 0.0
    %297 = vmatpush1.msra.mxu0 0.0
    %298 = vmatprep.subr.mxu0 0.0
    %299 = vmatpush1.msra.mxu0 0.0
    %300 = vmatprep.subr.mxu0 0.0
    %301 = vmatpush1.msra.mxu0 0.0
    %302 = vmatprep.subr.mxu0 0.0
    %303 = vmatpush1.msra.mxu0 0.0
    %304 = vmatprep.subr.mxu0 0.0
    %305 = vmatpush1.msra.mxu0 0.0
    %306 = vmatprep.subr.mxu0 0.0
    %307 = vmatpush1.msra.mxu0 0.0
    %308 = vmatprep.subr.mxu0 0.0
    %309 = vmatpush1.msra.mxu0 0.0
    %310 = vmatprep.subr.mxu0 0.0
    %311 = vmatpush1.msra.mxu0 0.0
    %312 = vmatprep.subr.mxu0 0.0
    %313 = vmatpush1.msra.mxu0 0.0
    %314 = vmatprep.subr.mxu0 0.0
    %315 = vmatpush1.msra.mxu0 0.0
    %316 = vmatprep.subr.mxu0 0.0
    %317 = vmatpush1.msra.mxu0 %v210
    %318 = vmatprep.subr.mxu0 0.0
    %319 = vmatpush1.msra.mxu0 %v209
    %320 = vmatprep.subr.mxu0 0.0
    %321 = vmatpush1.msra.mxu0 %v208
    %322 = vmatprep.subr.mxu0 0.0
    %323 = vmatpush1.msra.mxu0 %v207
    %324 = vmatprep.subr.mxu0 0.0
    %325 = vmatpush2.msra.mxu0 0.0
    %326 = vmatprep.subr.mxu0 0.0
    %327 = vmatpush2.msra.mxu0 0.0
    %328 = vmatprep.subr.mxu0 0.0
    %329 = vmatpush2.msra.mxu0 0.0
    %330 = vmatprep.subr.mxu0 0.0
    %331 = vmatpush2.msra.mxu0 0.0
    %332 = vmatprep.subr.mxu0 0.0
    %333 = vmatpush2.msra.mxu0 0.0
    %334 = vmatprep.subr.mxu0 0.0
    %335 = vmatpush2.msra.mxu0 0.0
    %336 = vmatprep.subr.mxu0 0.0
    %337 = vmatpush2.msra.mxu0 0.0
    %338 = vmatprep.subr.mxu0 0.0
    %339 = vmatpush2.msra.mxu0 0.0
    %340 = vmatprep.subr.mxu0 0.0
    %341 = vmatpush2.msra.mxu0 0.0
    %342 = vmatprep.subr.mxu0 0.0
    %343 = vmatpush2.msra.mxu0 0.0
    %344 = vmatprep.subr.mxu0 0.0
    %345 = vmatpush2.msra.mxu0 0.0
    %346 = vmatprep.subr.mxu0 0.0
    %347 = vmatpush2.msra.mxu0 0.0
    %348 = vmatprep.subr.mxu0 0.0
    %349 = vmatpush2.msra.mxu0 0.0
    %350 = vmatprep.subr.mxu0 0.0
    %351 = vmatpush2.msra.mxu0 0.0
    %352 = vmatprep.subr.mxu0 0.0
    %353 = vmatpush2.msra.mxu0 0.0
    %354 = vmatprep.subr.mxu0 0.0
    %355 = vmatpush2.msra.mxu0 0.0
    %356 = vmatprep.mubr.f32.mxu0 0.0
    %357 = vmatmul.mubr.f32.gmra.mxu0 %v290
    %v358 = vpop.f32.mrf.mxu0
    %v359 = vadd.f32 0.0, %v358
    %v360 = vpop.f32.mrf.mxu0
    %361 = vdwg.mxu0
    %v363 = vrot.slane %v359, 6
    %v365 = vadd.f32 %v199, %v363
    %v366 = vtanh.pop %v365
    %s367 = scalar_lea.vmem [#allocation6], 2
    %vm368 = vcmask 257026
    %369 = vst.msk [vmem:[%s367 - $0x2] sm:$0xc] %vm368, %v366
    %v371 = vrot.slane %v366, 2
    %v372 = vsel %vm211, %v371, 0
    %374 = vmatprep.subr.mxu0 0.0
    %375 = vmatpush1.msra.mxu0 0.0
    %376 = vmatprep.subr.mxu0 0.0
    %377 = vmatpush1.msra.mxu0 0.0
    %378 = vmatprep.subr.mxu0 0.0
    %379 = vmatpush1.msra.mxu0 0.0
    %380 = vmatprep.subr.mxu0 0.0
    %381 = vmatpush1.msra.mxu0 0.0
    %382 = vmatprep.subr.mxu0 0.0
    %383 = vmatpush1.msra.mxu0 0.0
    %384 = vmatprep.subr.mxu0 0.0
    %385 = vmatpush1.msra.mxu0 0.0
    %386 = vmatprep.subr.mxu0 0.0
    %387 = vmatpush1.msra.mxu0 0.0
    %388 = vmatprep.subr.mxu0 0.0
    %389 = vmatpush1.msra.mxu0 0.0
    %390 = vmatprep.subr.mxu0 0.0
    %391 = vmatpush1.msra.mxu0 0.0
    %392 = vmatprep.subr.mxu0 0.0
    %393 = vmatpush1.msra.mxu0 0.0
    %394 = vmatprep.subr.mxu0 0.0
    %395 = vmatpush1.msra.mxu0 0.0
    %396 = vmatprep.subr.mxu0 0.0
    %397 = vmatpush1.msra.mxu0 0.0
    %398 = vmatprep.subr.mxu0 0.0
    %399 = vmatpush1.msra.mxu0 %v210
    %400 = vmatprep.subr.mxu0 0.0
    %401 = vmatpush1.msra.mxu0 %v209
    %402 = vmatprep.subr.mxu0 0.0
    %403 = vmatpush1.msra.mxu0 %v208
    %404 = vmatprep.subr.mxu0 0.0
    %405 = vmatpush1.msra.mxu0 %v207
    %406 = vmatprep.subr.mxu0 0.0
    %407 = vmatpush2.msra.mxu0 0.0
    %408 = vmatprep.subr.mxu0 0.0
    %409 = vmatpush2.msra.mxu0 0.0
    %410 = vmatprep.subr.mxu0 0.0
    %411 = vmatpush2.msra.mxu0 0.0
    %412 = vmatprep.subr.mxu0 0.0
    %413 = vmatpush2.msra.mxu0 0.0
    %414 = vmatprep.subr.mxu0 0.0
    %415 = vmatpush2.msra.mxu0 0.0
    %416 = vmatprep.subr.mxu0 0.0
    %417 = vmatpush2.msra.mxu0 0.0
    %418 = vmatprep.subr.mxu0 0.0
    %419 = vmatpush2.msra.mxu0 0.0
    %420 = vmatprep.subr.mxu0 0.0
    %421 = vmatpush2.msra.mxu0 0.0
    %422 = vmatprep.subr.mxu0 0.0
    %423 = vmatpush2.msra.mxu0 0.0
    %424 = vmatprep.subr.mxu0 0.0
    %425 = vmatpush2.msra.mxu0 0.0
    %426 = vmatprep.subr.mxu0 0.0
    %427 = vmatpush2.msra.mxu0 0.0
    %428 = vmatprep.subr.mxu0 0.0
    %429 = vmatpush2.msra.mxu0 0.0
    %430 = vmatprep.subr.mxu0 0.0
    %431 = vmatpush2.msra.mxu0 0.0
    %432 = vmatprep.subr.mxu0 0.0
    %433 = vmatpush2.msra.mxu0 0.0
    %434 = vmatprep.subr.mxu0 0.0
    %435 = vmatpush2.msra.mxu0 0.0
    %436 = vmatprep.subr.mxu0 0.0
    %437 = vmatpush2.msra.mxu0 0.0
    %438 = vmatprep.mubr.f32.mxu0 0.0
    %439 = vmatmul.mubr.f32.gmra.mxu0 %v372
    %v440 = vpop.f32.mrf.mxu0
    %v441 = vadd.f32 0.0, %v440
    %v442 = vpop.f32.mrf.mxu0
    %443 = vdwg.mxu0
    %v445 = vrot.slane %v441, 4
    %v447 = vadd.f32 %v199, %v445
    %v448 = vtanh.pop %v447
    %s449 = scalar_lea.vmem [#allocation6], 4
    %vm450 = vcmask 259076
    %451 = vst.msk [vmem:[%s449 - $0x4] sm:$0x30] %vm450, %v448
    %v453 = vrot.slane %v448, 4
    %v454 = vsel %vm211, %v453, 0
    %456 = vmatprep.subr.mxu0 0.0
    %457 = vmatpush1.msra.mxu0 0.0
    %458 = vmatprep.subr.mxu0 0.0
    %459 = vmatpush1.msra.mxu0 0.0
    %460 = vmatprep.subr.mxu0 0.0
    %461 = vmatpush1.msra.mxu0 0.0
    %462 = vmatprep.subr.mxu0 0.0
    %463 = vmatpush1.msra.mxu0 0.0
    %464 = vmatprep.subr.mxu0 0.0
    %465 = vmatpush1.msra.mxu0 0.0
    %466 = vmatprep.subr.mxu0 0.0
    %467 = vmatpush1.msra.mxu0 0.0
    %468 = vmatprep.subr.mxu0 0.0
    %469 = vmatpush1.msra.mxu0 0.0
    %470 = vmatprep.subr.mxu0 0.0
    %471 = vmatpush1.msra.mxu0 0.0
    %472 = vmatprep.subr.mxu0 0.0
    %473 = vmatpush1.msra.mxu0 0.0
    %474 = vmatprep.subr.mxu0 0.0
    %475 = vmatpush1.msra.mxu0 0.0
    %476 = vmatprep.subr.mxu0 0.0
    %477 = vmatpush1.msra.mxu0 0.0
    %478 = vmatprep.subr.mxu0 0.0
    %479 = vmatpush1.msra.mxu0 0.0
    %480 = vmatprep.subr.mxu0 0.0
    %481 = vmatpush1.msra.mxu0 %v210
    %482 = vmatprep.subr.mxu0 0.0
    %483 = vmatpush1.msra.mxu0 %v209
    %484 = vmatprep.subr.mxu0 0.0
    %485 = vmatpush1.msra.mxu0 %v208
    %486 = vmatprep.subr.mxu0 0.0
    %487 = vmatpush1.msra.mxu0 %v207
    %488 = vmatprep.subr.mxu0 0.0
    %489 = vmatpush2.msra.mxu0 0.0
    %490 = vmatprep.subr.mxu0 0.0
    %491 = vmatpush2.msra.mxu0 0.0
    %492 = vmatprep.subr.mxu0 0.0
    %493 = vmatpush2.msra.mxu0 0.0
    %494 = vmatprep.subr.mxu0 0.0
    %495 = vmatpush2.msra.mxu0 0.0
    %496 = vmatprep.subr.mxu0 0.0
    %497 = vmatpush2.msra.mxu0 0.0
    %498 = vmatprep.subr.mxu0 0.0
    %499 = vmatpush2.msra.mxu0 0.0
    %500 = vmatprep.subr.mxu0 0.0
    %501 = vmatpush2.msra.mxu0 0.0
    %502 = vmatprep.subr.mxu0 0.0
    %503 = vmatpush2.msra.mxu0 0.0
    %504 = vmatprep.subr.mxu0 0.0
    %505 = vmatpush2.msra.mxu0 0.0
    %506 = vmatprep.subr.mxu0 0.0
    %507 = vmatpush2.msra.mxu0 0.0
    %508 = vmatprep.subr.mxu0 0.0
    %509 = vmatpush2.msra.mxu0 0.0
    %510 = vmatprep.subr.mxu0 0.0
    %511 = vmatpush2.msra.mxu0 0.0
    %512 = vmatprep.subr.mxu0 0.0
    %513 = vmatpush2.msra.mxu0 0.0
    %514 = vmatprep.subr.mxu0 0.0
    %515 = vmatpush2.msra.mxu0 0.0
    %516 = vmatprep.subr.mxu0 0.0
    %517 = vmatpush2.msra.mxu0 0.0
    %518 = vmatprep.subr.mxu0 0.0
    %519 = vmatpush2.msra.mxu0 0.0
    %520 = vmatprep.mubr.f32.mxu0 0.0
    %521 = vmatmul.mubr.f32.gmra.mxu0 %v454
    %v522 = vpop.f32.mrf.mxu0
    %v523 = vadd.f32 0.0, %v522
    %v524 = vpop.f32.mrf.mxu0
    %525 = vdwg.mxu0
    %v527 = vrot.slane %v523, 2
    %v529 = vadd.f32 %v199, %v527
    %v530 = vtanh.pop %v529
    %s531 = scalar_lea.vmem [#allocation6], 6
    %vm532 = vcmask 261126
    %533 = vst.msk [vmem:[%s531 - $0x6] sm:$0xc0] %vm532, %v530
    %v535 = vrot.slane %v530, 6
    %v536 = vsel %vm211, %v535, 0
    %538 = vmatprep.subr.mxu0 0.0
    %539 = vmatpush1.msra.mxu0 0.0
    %540 = vmatprep.subr.mxu0 0.0
    %541 = vmatpush1.msra.mxu0 0.0
    %542 = vmatprep.subr.mxu0 0.0
    %543 = vmatpush1.msra.mxu0 0.0
    %544 = vmatprep.subr.mxu0 0.0
    %545 = vmatpush1.msra.mxu0 0.0
    %546 = vmatprep.subr.mxu0 0.0
    %547 = vmatpush1.msra.mxu0 0.0
    %548 = vmatprep.subr.mxu0 0.0
    %549 = vmatpush1.msra.mxu0 0.0
    %550 = vmatprep.subr.mxu0 0.0
    %551 = vmatpush1.msra.mxu0 0.0
    %552 = vmatprep.subr.mxu0 0.0
    %553 = vmatpush1.msra.mxu0 0.0
    %554 = vmatprep.subr.mxu0 0.0
    %555 = vmatpush1.msra.mxu0 0.0
    %556 = vmatprep.subr.mxu0 0.0
    %557 = vmatpush1.msra.mxu0 0.0
    %558 = vmatprep.subr.mxu0 0.0
    %559 = vmatpush1.msra.mxu0 0.0
    %560 = vmatprep.subr.mxu0 0.0
    %561 = vmatpush1.msra.mxu0 0.0
    %562 = vmatprep.subr.mxu0 0.0
    %563 = vmatpush1.msra.mxu0 %v210
    %564 = vmatprep.subr.mxu0 0.0
    %565 = vmatpush1.msra.mxu0 %v209
    %566 = vmatprep.subr.mxu0 0.0
    %567 = vmatpush1.msra.mxu0 %v208
    %568 = vmatprep.subr.mxu0 0.0
    %569 = vmatpush1.msra.mxu0 %v207
    %570 = vmatprep.subr.mxu0 0.0
    %571 = vmatpush2.msra.mxu0 0.0
    %572 = vmatprep.subr.mxu0 0.0
    %573 = vmatpush2.msra.mxu0 0.0
    %574 = vmatprep.subr.mxu0 0.0
    %575 = vmatpush2.msra.mxu0 0.0
    %576 = vmatprep.subr.mxu0 0.0
    %577 = vmatpush2.msra.mxu0 0.0
    %578 = vmatprep.subr.mxu0 0.0
    %579 = vmatpush2.msra.mxu0 0.0
    %580 = vmatprep.subr.mxu0 0.0
    %581 = vmatpush2.msra.mxu0 0.0
    %582 = vmatprep.subr.mxu0 0.0
    %583 = vmatpush2.msra.mxu0 0.0
    %584 = vmatprep.subr.mxu0 0.0
    %585 = vmatpush2.msra.mxu0 0.0
    %586 = vmatprep.subr.mxu0 0.0
    %587 = vmatpush2.msra.mxu0 0.0
    %588 = vmatprep.subr.mxu0 0.0
    %589 = vmatpush2.msra.mxu0 0.0
    %590 = vmatprep.subr.mxu0 0.0
    %591 = vmatpush2.msra.mxu0 0.0
    %592 = vmatprep.subr.mxu0 0.0
    %593 = vmatpush2.msra.mxu0 0.0
    %594 = vmatprep.subr.mxu0 0.0
    %595 = vmatpush2.msra.mxu0 0.0
    %596 = vmatprep.subr.mxu0 0.0
    %597 = vmatpush2.msra.mxu0 0.0
    %598 = vmatprep.subr.mxu0 0.0
    %599 = vmatpush2.msra.mxu0 0.0
    %600 = vmatprep.subr.mxu0 0.0
    %601 = vmatpush2.msra.mxu0 0.0
    %602 = vmatprep.mubr.f32.mxu0 0.0
    %603 = vmatmul.mubr.f32.gmra.mxu0 %v536
    %v604 = vpop.f32.mrf.mxu0
    %v605 = vadd.f32 0.0, %v604
    %v606 = vpop.f32.mrf.mxu0
    %607 = vdwg.mxu0
    %v608 = vadd.f32 %v204, %v605
    %v609 = vtanh.pop %v608
    %s610 = scalar_lea.vmem [#allocation6], 8
    %611 = vst.msk [vmem:[%s610] sm:$0x3] %vm287, %v609
    %v613 = vsel %vm211, %v609, 0
    %615 = vmatprep.subr.mxu0 0.0
    %616 = vmatpush1.msra.mxu0 0.0
    %617 = vmatprep.subr.mxu0 0.0
    %618 = vmatpush1.msra.mxu0 0.0
    %619 = vmatprep.subr.mxu0 0.0
    %620 = vmatpush1.msra.mxu0 0.0
    %621 = vmatprep.subr.mxu0 0.0
    %622 = vmatpush1.msra.mxu0 0.0
    %623 = vmatprep.subr.mxu0 0.0
    %624 = vmatpush1.msra.mxu0 0.0
    %625 = vmatprep.subr.mxu0 0.0
    %626 = vmatpush1.msra.mxu0 0.0
    %627 = vmatprep.subr.mxu0 0.0
    %628 = vmatpush1.msra.mxu0 0.0
    %629 = vmatprep.subr.mxu0 0.0
    %630 = vmatpush1.msra.mxu0 0.0
    %631 = vmatprep.subr.mxu0 0.0
    %632 = vmatpush1.msra.mxu0 0.0
    %633 = vmatprep.subr.mxu0 0.0
    %634 = vmatpush1.msra.mxu0 0.0
    %635 = vmatprep.subr.mxu0 0.0
    %636 = vmatpush1.msra.mxu0 0.0
    %637 = vmatprep.subr.mxu0 0.0
    %638 = vmatpush1.msra.mxu0 0.0
    %639 = vmatprep.subr.mxu0 0.0
    %640 = vmatpush1.msra.mxu0 %v210
    %641 = vmatprep.subr.mxu0 0.0
    %642 = vmatpush1.msra.mxu0 %v209
    %643 = vmatprep.subr.mxu0 0.0
    %644 = vmatpush1.msra.mxu0 %v208
    %645 = vmatprep.subr.mxu0 0.0
    %646 = vmatpush1.msra.mxu0 %v207
    %647 = vmatprep.subr.mxu0 0.0
    %648 = vmatpush2.msra.mxu0 0.0
    %649 = vmatprep.subr.mxu0 0.0
    %650 = vmatpush2.msra.mxu0 0.0
    %651 = vmatprep.subr.mxu0 0.0
    %652 = vmatpush2.msra.mxu0 0.0
    %653 = vmatprep.subr.mxu0 0.0
    %654 = vmatpush2.msra.mxu0 0.0
    %655 = vmatprep.subr.mxu0 0.0
    %656 = vmatpush2.msra.mxu0 0.0
    %657 = vmatprep.subr.mxu0 0.0
    %658 = vmatpush2.msra.mxu0 0.0
    %659 = vmatprep.subr.mxu0 0.0
    %660 = vmatpush2.msra.mxu0 0.0
    %661 = vmatprep.subr.mxu0 0.0
    %662 = vmatpush2.msra.mxu0 0.0
    %663 = vmatprep.subr.mxu0 0.0
    %664 = vmatpush2.msra.mxu0 0.0
    %665 = vmatprep.subr.mxu0 0.0
    %666 = vmatpush2.msra.mxu0 0.0
    %667 = vmatprep.subr.mxu0 0.0
    %668 = vmatpush2.msra.mxu0 0.0
    %669 = vmatprep.subr.mxu0 0.0
    %670 = vmatpush2.msra.mxu0 0.0
    %671 = vmatprep.subr.mxu0 0.0
    %672 = vmatpush2.msra.mxu0 0.0
    %673 = vmatprep.subr.mxu0 0.0
    %674 = vmatpush2.msra.mxu0 0.0
    %675 = vmatprep.subr.mxu0 0.0
    %676 = vmatpush2.msra.mxu0 0.0
    %677 = vmatprep.subr.mxu0 0.0
    %678 = vmatpush2.msra.mxu0 0.0
    %679 = vmatprep.mubr.f32.mxu0 0.0
    %680 = vmatmul.mubr.f32.gmra.mxu0 %v613
    %v681 = vpop.f32.mrf.mxu0
    %v682 = vadd.f32 0.0, %v681
    %v683 = vpop.f32.mrf.mxu0
    %684 = vdwg.mxu0
    %v686 = vrot.slane %v682, 6
    %v688 = vadd.f32 %v204, %v686
    %v689 = vtanh.pop %v688
    %s690 = scalar_lea.vmem [#allocation6], 10
    %691 = vst.msk [vmem:[%s690 - $0x2] sm:$0xc] %vm368, %v689
    %v693 = vrot.slane %v689, 2
    %v694 = vsel %vm211, %v693, 0
    %696 = vmatprep.subr.mxu0 0.0
    %697 = vmatpush1.msra.mxu0 0.0
    %698 = vmatprep.subr.mxu0 0.0
    %699 = vmatpush1.msra.mxu0 0.0
    %700 = vmatprep.subr.mxu0 0.0
    %701 = vmatpush1.msra.mxu0 0.0
    %702 = vmatprep.subr.mxu0 0.0
    %703 = vmatpush1.msra.mxu0 0.0
    %704 = vmatprep.subr.mxu0 0.0
    %705 = vmatpush1.msra.mxu0 0.0
    %706 = vmatprep.subr.mxu0 0.0
    %707 = vmatpush1.msra.mxu0 0.0
    %708 = vmatprep.subr.mxu0 0.0
    %709 = vmatpush1.msra.mxu0 0.0
    %710 = vmatprep.subr.mxu0 0.0
    %711 = vmatpush1.msra.mxu0 0.0
    %712 = vmatprep.subr.mxu0 0.0
    %713 = vmatpush1.msra.mxu0 0.0
    %714 = vmatprep.subr.mxu0 0.0
    %715 = vmatpush1.msra.mxu0 0.0
    %716 = vmatprep.subr.mxu0 0.0
    %717 = vmatpush1.msra.mxu0 0.0
    %718 = vmatprep.subr.mxu0 0.0
    %719 = vmatpush1.msra.mxu0 0.0
    %720 = vmatprep.subr.mxu0 0.0
    %721 = vmatpush1.msra.mxu0 %v210
    %722 = vmatprep.subr.mxu0 0.0
    %723 = vmatpush1.msra.mxu0 %v209
    %724 = vmatprep.subr.mxu0 0.0
    %725 = vmatpush1.msra.mxu0 %v208
    %726 = vmatprep.subr.mxu0 0.0
    %727 = vmatpush1.msra.mxu0 %v207
    %728 = vmatprep.subr.mxu0 0.0
    %729 = vmatpush2.msra.mxu0 0.0
    %730 = vmatprep.subr.mxu0 0.0
    %731 = vmatpush2.msra.mxu0 0.0
    %732 = vmatprep.subr.mxu0 0.0
    %733 = vmatpush2.msra.mxu0 0.0
    %734 = vmatprep.subr.mxu0 0.0
    %735 = vmatpush2.msra.mxu0 0.0
    %736 = vmatprep.subr.mxu0 0.0
    %737 = vmatpush2.msra.mxu0 0.0
    %738 = vmatprep.subr.mxu0 0.0
    %739 = vmatpush2.msra.mxu0 0.0
    %740 = vmatprep.subr.mxu0 0.0
    %741 = vmatpush2.msra.mxu0 0.0
    %742 = vmatprep.subr.mxu0 0.0
    %743 = vmatpush2.msra.mxu0 0.0
    %744 = vmatprep.subr.mxu0 0.0
    %745 = vmatpush2.msra.mxu0 0.0
    %746 = vmatprep.subr.mxu0 0.0
    %747 = vmatpush2.msra.mxu0 0.0
    %748 = vmatprep.subr.mxu0 0.0
    %749 = vmatpush2.msra.mxu0 0.0
    %750 = vmatprep.subr.mxu0 0.0
    %751 = vmatpush2.msra.mxu0 0.0
    %752 = vmatprep.subr.mxu0 0.0
    %753 = vmatpush2.msra.mxu0 0.0
    %754 = vmatprep.subr.mxu0 0.0
    %755 = vmatpush2.msra.mxu0 0.0
    %756 = vmatprep.subr.mxu0 0.0
    %757 = vmatpush2.msra.mxu0 0.0
    %758 = vmatprep.subr.mxu0 0.0
    %759 = vmatpush2.msra.mxu0 0.0
    %760 = vmatprep.mubr.f32.mxu0 0.0
    %761 = vmatmul.mubr.f32.gmra.mxu0 %v694
    %v762 = vpop.f32.mrf.mxu0
    %v763 = vadd.f32 0.0, %v762
    %v764 = vpop.f32.mrf.mxu0
    %765 = vdwg.mxu0
    %v767 = vrot.slane %v763, 4
    %v769 = vadd.f32 %v204, %v767
    %v770 = vtanh.pop %v769
    %s771 = scalar_lea.vmem [#allocation6], 12
    %772 = vst.msk [vmem:[%s771 - $0x4] sm:$0x30] %vm450, %v770
    %v774 = vrot.slane %v770, 4
    %v775 = vsel %vm211, %v774, 0
    %777 = vmatprep.subr.mxu0 0.0
    %778 = vmatpush1.msra.mxu0 0.0
    %779 = vmatprep.subr.mxu0 0.0
    %780 = vmatpush1.msra.mxu0 0.0
    %781 = vmatprep.subr.mxu0 0.0
    %782 = vmatpush1.msra.mxu0 0.0
    %783 = vmatprep.subr.mxu0 0.0
    %784 = vmatpush1.msra.mxu0 0.0
    %785 = vmatprep.subr.mxu0 0.0
    %786 = vmatpush1.msra.mxu0 0.0
    %787 = vmatprep.subr.mxu0 0.0
    %788 = vmatpush1.msra.mxu0 0.0
    %789 = vmatprep.subr.mxu0 0.0
    %790 = vmatpush1.msra.mxu0 0.0
    %791 = vmatprep.subr.mxu0 0.0
    %792 = vmatpush1.msra.mxu0 0.0
    %793 = vmatprep.subr.mxu0 0.0
    %794 = vmatpush1.msra.mxu0 0.0
    %795 = vmatprep.subr.mxu0 0.0
    %796 = vmatpush1.msra.mxu0 0.0
    %797 = vmatprep.subr.mxu0 0.0
    %798 = vmatpush1.msra.mxu0 0.0
    %799 = vmatprep.subr.mxu0 0.0
    %800 = vmatpush1.msra.mxu0 0.0
    %801 = vmatprep.subr.mxu0 0.0
    %802 = vmatpush1.msra.mxu0 %v210
    %803 = vmatprep.subr.mxu0 0.0
    %804 = vmatpush1.msra.mxu0 %v209
    %805 = vmatprep.subr.mxu0 0.0
    %806 = vmatpush1.msra.mxu0 %v208
    %807 = vmatprep.subr.mxu0 0.0
    %808 = vmatpush1.msra.mxu0 %v207
    %809 = vmatprep.subr.mxu0 0.0
    %810 = vmatpush2.msra.mxu0 0.0
    %811 = vmatprep.subr.mxu0 0.0
    %812 = vmatpush2.msra.mxu0 0.0
    %813 = vmatprep.subr.mxu0 0.0
    %814 = vmatpush2.msra.mxu0 0.0
    %815 = vmatprep.subr.mxu0 0.0
    %816 = vmatpush2.msra.mxu0 0.0
    %817 = vmatprep.subr.mxu0 0.0
    %818 = vmatpush2.msra.mxu0 0.0
    %819 = vmatprep.subr.mxu0 0.0
    %820 = vmatpush2.msra.mxu0 0.0
    %821 = vmatprep.subr.mxu0 0.0
    %822 = vmatpush2.msra.mxu0 0.0
    %823 = vmatprep.subr.mxu0 0.0
    %824 = vmatpush2.msra.mxu0 0.0
    %825 = vmatprep.subr.mxu0 0.0
    %826 = vmatpush2.msra.mxu0 0.0
    %827 = vmatprep.subr.mxu0 0.0
    %828 = vmatpush2.msra.mxu0 0.0
    %829 = vmatprep.subr.mxu0 0.0
    %830 = vmatpush2.msra.mxu0 0.0
    %831 = vmatprep.subr.mxu0 0.0
    %832 = vmatpush2.msra.mxu0 0.0
    %833 = vmatprep.subr.mxu0 0.0
    %834 = vmatpush2.msra.mxu0 0.0
    %835 = vmatprep.subr.mxu0 0.0
    %836 = vmatpush2.msra.mxu0 0.0
    %837 = vmatprep.subr.mxu0 0.0
    %838 = vmatpush2.msra.mxu0 0.0
    %839 = vmatprep.subr.mxu0 0.0
    %840 = vmatpush2.msra.mxu0 0.0
    %841 = vmatprep.mubr.f32.mxu0 0.0
    %842 = vmatmul.mubr.f32.gmra.mxu0 %v775
    %v843 = vpop.f32.mrf.mxu0
    %v844 = vadd.f32 0.0, %v843
    %v845 = vpop.f32.mrf.mxu0
    %846 = vdwg.mxu0
    %v848 = vrot.slane %v844, 2
    %v850 = vadd.f32 %v204, %v848
    %v851 = vtanh.pop %v850
    %s852 = scalar_lea.vmem [#allocation6], 14
    %853 = vst.msk [vmem:[%s852 - $0x6] sm:$0xc0] %vm532, %v851
    %v854 = vld [vmem:[%s5] sm:$0xff]
    %v855 = vld [vmem:[%s5 + $0x8] sm:$0xff]
    %v856 = vld [vmem:[%s5 + $0x10] sm:$0xff]
    %v857 = vld [vmem:[%s5 + $0x18] sm:$0xff]
    %v858 = vld [vmem:[%s6] sm:$0x1]
    %v860 = vlaneseq
    %v861 = vshrl.u32 %v860, 7
    %v862 = vsub.s32 0, %v861
    %v863 = vrot.slane %v858, %v862
    %v866 = vrot.slane %v851, 6
    %v867 = vsel %vm211, %v866, 0
    %869 = vmatprep.subr.mxu0 0.0
    %870 = vmatpush1.msra.mxu0 0.0
    %871 = vmatprep.subr.mxu0 0.0
    %872 = vmatpush1.msra.mxu0 0.0
    %873 = vmatprep.subr.mxu0 0.0
    %874 = vmatpush1.msra.mxu0 0.0
    %875 = vmatprep.subr.mxu0 0.0
    %876 = vmatpush1.msra.mxu0 0.0
    %877 = vmatprep.subr.mxu0 0.0
    %878 = vmatpush1.msra.mxu0 0.0
    %879 = vmatprep.subr.mxu0 0.0
    %880 = vmatpush1.msra.mxu0 0.0
    %881 = vmatprep.subr.mxu0 0.0
    %882 = vmatpush1.msra.mxu0 0.0
    %883 = vmatprep.subr.mxu0 0.0
    %884 = vmatpush1.msra.mxu0 0.0
    %885 = vmatprep.subr.mxu0 0.0
    %886 = vmatpush1.msra.mxu0 0.0
    %887 = vmatprep.subr.mxu0 0.0
    %888 = vmatpush1.msra.mxu0 0.0
    %889 = vmatprep.subr.mxu0 0.0
    %890 = vmatpush1.msra.mxu0 0.0
    %891 = vmatprep.subr.mxu0 0.0
    %892 = vmatpush1.msra.mxu0 0.0
    %893 = vmatprep.subr.mxu0 0.0
    %894 = vmatpush1.msra.mxu0 %v857
    %895 = vmatprep.subr.mxu0 0.0
    %896 = vmatpush1.msra.mxu0 %v856
    %897 = vmatprep.subr.mxu0 0.0
    %898 = vmatpush1.msra.mxu0 %v855
    %899 = vmatprep.subr.mxu0 0.0
    %900 = vmatpush1.msra.mxu0 %v854
    %901 = vmatprep.subr.mxu0 0.0
    %902 = vmatpush2.msra.mxu0 0.0
    %903 = vmatprep.subr.mxu0 0.0
    %904 = vmatpush2.msra.mxu0 0.0
    %905 = vmatprep.subr.mxu0 0.0
    %906 = vmatpush2.msra.mxu0 0.0
    %907 = vmatprep.subr.mxu0 0.0
    %908 = vmatpush2.msra.mxu0 0.0
    %909 = vmatprep.subr.mxu0 0.0
    %910 = vmatpush2.msra.mxu0 0.0
    %911 = vmatprep.subr.mxu0 0.0
    %912 = vmatpush2.msra.mxu0 0.0
    %913 = vmatprep.subr.mxu0 0.0
    %914 = vmatpush2.msra.mxu0 0.0
    %915 = vmatprep.subr.mxu0 0.0
    %916 = vmatpush2.msra.mxu0 0.0
    %917 = vmatprep.subr.mxu0 0.0
    %918 = vmatpush2.msra.mxu0 0.0
    %919 = vmatprep.subr.mxu0 0.0
    %920 = vmatpush2.msra.mxu0 0.0
    %921 = vmatprep.subr.mxu0 0.0
    %922 = vmatpush2.msra.mxu0 0.0
    %923 = vmatprep.subr.mxu0 0.0
    %924 = vmatpush2.msra.mxu0 0.0
    %925 = vmatprep.subr.mxu0 0.0
    %926 = vmatpush2.msra.mxu0 0.0
    %927 = vmatprep.subr.mxu0 0.0
    %928 = vmatpush2.msra.mxu0 0.0
    %929 = vmatprep.subr.mxu0 0.0
    %930 = vmatpush2.msra.mxu0 0.0
    %931 = vmatprep.subr.mxu0 0.0
    %932 = vmatpush2.msra.mxu0 0.0
    %933 = vmatprep.mubr.f32.mxu0 0.0
    %934 = vmatmul.mubr.f32.gmra.mxu0 %v867
    %v935 = vpop.f32.mrf.mxu0
    %v936 = vadd.f32 %v863, %v935
    %v937 = vpop.f32.mrf.mxu0
    %938 = vdwg.mxu0
    %v939 = vtanh.pop %v936
    %v940 = vld [vmem:[%s7] sm:$0xff]
    %v941 = vld [vmem:[%s7 + $0x8] sm:$0xff]
    %v942 = vld [vmem:[%s7 + $0x10] sm:$0xff]
    %v943 = vld [vmem:[%s8] sm:$0x1]
    %v945 = vlaneseq
    %v946 = vshrl.u32 %v945, 7
    %v947 = vsub.s32 0, %v946
    %v948 = vrot.slane %v943, %v947
    %vm950 = vcmask 195584
    %v952 = vsel %vm950, %v939, 0
    %954 = vmatprep.subr.mxu0 0.0
    %955 = vmatpush1.msra.mxu0 0.0
    %956 = vmatprep.subr.mxu0 0.0
    %957 = vmatpush1.msra.mxu0 0.0
    %958 = vmatprep.subr.mxu0 0.0
    %959 = vmatpush1.msra.mxu0 0.0
    %960 = vmatprep.subr.mxu0 0.0
    %961 = vmatpush1.msra.mxu0 0.0
    %962 = vmatprep.subr.mxu0 0.0
    %963 = vmatpush1.msra.mxu0 0.0
    %964 = vmatprep.subr.mxu0 0.0
    %965 = vmatpush1.msra.mxu0 0.0
    %966 = vmatprep.subr.mxu0 0.0
    %967 = vmatpush1.msra.mxu0 0.0
    %968 = vmatprep.subr.mxu0 0.0
    %969 = vmatpush1.msra.mxu0 0.0
    %970 = vmatprep.subr.mxu0 0.0
    %971 = vmatpush1.msra.mxu0 0.0
    %972 = vmatprep.subr.mxu0 0.0
    %973 = vmatpush1.msra.mxu0 0.0
    %974 = vmatprep.subr.mxu0 0.0
    %975 = vmatpush1.msra.mxu0 0.0
    %976 = vmatprep.subr.mxu0 0.0
    %977 = vmatpush1.msra.mxu0 0.0
    %978 = vmatprep.subr.mxu0 0.0
    %979 = vmatpush1.msra.mxu0 0.0
    %980 = vmatprep.subr.mxu0 0.0
    %981 = vmatpush1.msra.mxu0 %v942
    %982 = vmatprep.subr.mxu0 0.0
    %983 = vmatpush1.msra.mxu0 %v941
    %984 = vmatprep.subr.mxu0 0.0
    %985 = vmatpush1.msra.mxu0 %v940
    %986 = vmatprep.subr.mxu0 0.0
    %987 = vmatpush2.msra.mxu0 0.0
    %988 = vmatprep.subr.mxu0 0.0
    %989 = vmatpush2.msra.mxu0 0.0
    %990 = vmatprep.subr.mxu0 0.0
    %991 = vmatpush2.msra.mxu0 0.0
    %992 = vmatprep.subr.mxu0 0.0
    %993 = vmatpush2.msra.mxu0 0.0
    %994 = vmatprep.subr.mxu0 0.0
    %995 = vmatpush2.msra.mxu0 0.0
    %996 = vmatprep.subr.mxu0 0.0
    %997 = vmatpush2.msra.mxu0 0.0
    %998 = vmatprep.subr.mxu0 0.0
    %999 = vmatpush2.msra.mxu0 0.0
    %1000 = vmatprep.subr.mxu0 0.0
    %1001 = vmatpush2.msra.mxu0 0.0
    %1002 = vmatprep.subr.mxu0 0.0
    %1003 = vmatpush2.msra.mxu0 0.0
    %1004 = vmatprep.subr.mxu0 0.0
    %1005 = vmatpush2.msra.mxu0 0.0
    %1006 = vmatprep.subr.mxu0 0.0
    %1007 = vmatpush2.msra.mxu0 0.0
    %1008 = vmatprep.subr.mxu0 0.0
    %1009 = vmatpush2.msra.mxu0 0.0
    %1010 = vmatprep.subr.mxu0 0.0
    %1011 = vmatpush2.msra.mxu0 0.0
    %1012 = vmatprep.subr.mxu0 0.0
    %1013 = vmatpush2.msra.mxu0 0.0
    %1014 = vmatprep.subr.mxu0 0.0
    %1015 = vmatpush2.msra.mxu0 0.0
    %1016 = vmatprep.subr.mxu0 0.0
    %1017 = vmatpush2.msra.mxu0 0.0
    %1018 = vmatprep.mubr.f32.mxu0 0.0
    %1019 = vmatmul.mubr.f32.gmra.mxu0 %v952
    %v1020 = vpop.f32.mrf.mxu0
    %v1021 = vadd.f32 %v948, %v1020
    %v1022 = vpop.f32.mrf.mxu0
    %1023 = vdwg.mxu0
    %vm1024 = vcmask 58368
    %1025 = vst.msk [vmem:[#allocation7] sm:$0x3] %vm1024, %v1021
    // Predicated region
    $region42: #{tpu_custom_call.1} parent=1 // pred_check
      _
    $region43: #{tpu_custom_call.1} parent=1 // pred_check_branch
      %1027 = sbr.rel (0) target = $region45
    $region44: #{tpu_custom_call.1} parent=1 // pred_region
      %s1029 = ssub.s32 256, 256
      %1030 = vsyncadd [#allocation4], %s1029
      %s1031 = sshll.u32 [#allocation6], 4
      %s1032 = int_to_ptr.vmem [resolvable:$true] %s1031
      %1037 = dma.vmem_to_hbm [thread:$0]  %s1032, 256, %s9, [#allocation4], 32, 32, 2
    $region45: #{tpu_custom_call.1} parent=1 // pred_fallthru
      _
    // Predicated region
    $region46: #{tpu_custom_call.1} parent=1 // pred_check
      _
    $region47: #{tpu_custom_call.1} parent=1 // pred_check_branch
      %1039 = sbr.rel (0) target = $region49
    $region48: #{tpu_custom_call.1} parent=1 // pred_region
      %s1041 = ssub.s32 32, 32
      %1042 = vsyncadd [#allocation8], %s1041
      %s1044 = sshll.u32 [#allocation7], 4
      %s1045 = int_to_ptr.vmem [resolvable:$true] %s1044
      %1047 = dma.vmem_to_hbm [thread:$0]  %s1045, 32, %s10, [#allocation8]
    $region49: #{tpu_custom_call.1} parent=1 // pred_fallthru
      _
    // Predicated region
    $region50: #{tpu_custom_call.1} parent=1 // pred_check
      _
    $region51: #{tpu_custom_call.1} parent=1 // pred_check_branch
      %1049 = sbr.rel (0) target = $region53
    $region52: #{tpu_custom_call.1} parent=1 // pred_region
      %1050 = dma.done [#allocation4], 256
    $region53: #{tpu_custom_call.1} parent=1 // pred_fallthru
      _
    // Predicated region
    $region54: #{tpu_custom_call.1} parent=1 // pred_check
      _
    $region55: #{tpu_custom_call.1} parent=1 // pred_check_branch
      %1052 = sbr.rel (0) target = $region57
    $region56: #{tpu_custom_call.1} parent=1 // pred_region
      %1053 = dma.done [#allocation8], 32
    $region57: #{tpu_custom_call.1} parent=1 // pred_fallthru
      _
    %1054 = vsyncpa [#allocation4], 1
    %1055 = vsyncpa [#allocation8], 1
    %1056 = vsyncpa [#allocation5], 1

</llo_original>
